<compile_context>
chip_gen: v6e
topology: v6e:2x2x1
jax: 0.10.0
libtpu: 0.0.40
codegen_flags: <defaults>
</compile_context>

<pallas_src>
import functools

import jax
import jax.numpy as jnp
from jax.experimental import pallas as pl
from jax.experimental.pallas import tpu as pltpu

_NEG_BIG = -1e30  # finite "minus infinity" (avoids inf-inf NaNs in the online LSE)


def _round_up(x, m):
    return ((x + m - 1) // m) * m


def _supcon_kernel(a_ref, c_ref, rlab_ref, clab_ref, out_ref,
                   m_sc, l_sc, sp_sc, sm_sc, *,
                   inv_temperature, loss_scale, n_rows, n_cols, blk):
    # a_ref:    (blk, D)  bf16 anchor-row features for this row tile
    # c_ref:    (blk, D)  bf16 contrast-column features for this column tile
    # rlab_ref: (blk, 1)  int32 labels of the anchor rows
    # clab_ref: (1, blk)  int32 labels of the contrast columns
    # out_ref:  (blk, 1)  per-anchor-row loss (written at the last column tile)
    # scratch:  per-row accumulators m (running max), l (running exp-sum),
    #           sp (sum mask*logits), sm (sum mask)
    i = pl.program_id(0)
    j = pl.program_id(1)

    @pl.when(j == 0)
    def _():
        m_sc[...] = jnp.full(m_sc.shape, _NEG_BIG, jnp.float32)
        l_sc[...] = jnp.zeros(l_sc.shape, jnp.float32)
        sp_sc[...] = jnp.zeros(sp_sc.shape, jnp.float32)
        sm_sc[...] = jnp.zeros(sm_sc.shape, jnp.float32)

    # Gram tile on the MXU: contract last dims of both operands (no transpose).
    logits = jax.lax.dot_general(
        a_ref[...], c_ref[...], (((1,), (1,)), ((), ())),
        preferred_element_type=jnp.float32) * inv_temperature          # (blk, blk)

    # In-kernel mask reconstruction (no [N, N] mask tensors in HBM/VMEM).
    row_ids = i * blk + jax.lax.broadcasted_iota(jnp.int32, (blk, blk), 0)
    col_ids = j * blk + jax.lax.broadcasted_iota(jnp.int32, (blk, blk), 1)
    lmask = jnp.logical_and(col_ids < n_cols, row_ids != col_ids)      # denom mask
    pmask = jnp.logical_and(rlab_ref[...] == clab_ref[...], lmask)     # positives

    # Positive-pair statistics (linear; no stabilization needed).
    sp_sc[...] += jnp.sum(jnp.where(pmask, logits, 0.0), axis=1, keepdims=True)
    sm_sc[...] += jnp.sum(pmask.astype(jnp.float32), axis=1, keepdims=True)

    # Online masked log-sum-exp over the contrast (column) axis.
    masked_logits = jnp.where(lmask, logits, _NEG_BIG)
    m_new = jnp.maximum(m_sc[...], jnp.max(masked_logits, axis=1, keepdims=True))
    l_sc[...] = (l_sc[...] * jnp.exp(m_sc[...] - m_new)
                 + jnp.sum(jnp.exp(masked_logits - m_new), axis=1, keepdims=True))
    m_sc[...] = m_new

    @pl.when(j == pl.num_programs(1) - 1)
    def _():
        lse = m_sc[...] + jnp.log(l_sc[...])          # log sum_{j!=i,valid} exp(logits)
        sm = sm_sc[...]
        mean_log_prob_pos = sp_sc[...] / jnp.maximum(sm, 1.0) - lse
        loss = -loss_scale * mean_log_prob_pos
        # Zero padded rows and rows with no positives (guarded divide).
        valid = jnp.logical_and(row_ids[:, :1] < n_rows, sm > 0.0)
        out_ref[...] = jnp.where(valid, loss, 0.0)


def supcon_loss(features, labels=None, mask=None, *,
                temperature=0.07, contrast_mode='all', base_temperature=0.07,
                block_size=256):
    """Pallas TPU implementation of SupConLoss.forward."""
    if features.ndim < 3:
        raise ValueError('`features` needs to be [bsz, n_views, ...]')
    if features.ndim > 3:
        features = features.reshape(features.shape[0], features.shape[1], -1)
    B, V, D = features.shape

    if labels is not None and mask is not None:
        raise ValueError('Cannot define both `labels` and `mask`')
    if mask is not None:
        # TODO(synk): arbitrary dense `mask` input is not supported by the
        # label-based in-kernel mask reconstruction; pass `labels` instead.
        raise NotImplementedError('explicit `mask` argument not supported; use `labels`')
    if labels is None:
        labels = jnp.arange(B, dtype=jnp.int32)   # eye(B): positives = same sample
    labels = jnp.asarray(labels).reshape(-1).astype(jnp.int32)
    if labels.shape[0] != B:
        raise ValueError('Num of labels does not match num of features')

    if contrast_mode == 'all':
        n_rows = V * B                 # anchors = every view
    elif contrast_mode == 'one':
        n_rows = B                     # anchors = view 0 (first B view-major rows)
    else:
        raise ValueError('Unknown mode: {}'.format(contrast_mode))

    # contrast_feature = cat(unbind(features, dim=1), dim=0): view-major [V*B, D].
    contrast = jnp.transpose(features, (1, 0, 2)).reshape(V * B, D)
    contrast = contrast.astype(jnp.bfloat16)        # MXU-native input, f32 accumulation
    vm_labels = jnp.tile(labels, V)                 # label of each view-major row
    n_cols = V * B

    blk = max(128, (int(block_size) // 128) * 128)
    blk = min(blk, _round_up(n_cols, 128))
    cols_pad = _round_up(n_cols, blk)
    rows_pad = _round_up(n_rows, blk)               # rows_pad <= cols_pad

    pad = cols_pad - n_cols
    feat_pad = jnp.pad(contrast, ((0, pad), (0, 0)))
    lab_pad = jnp.pad(vm_labels, (0, pad), constant_values=-1)
    row_labels = lab_pad.reshape(cols_pad, 1)
    col_labels = lab_pad.reshape(1, cols_pad)

    kernel = functools.partial(
        _supcon_kernel,
        inv_temperature=1.0 / float(temperature),
        loss_scale=float(temperature) / float(base_temperature),
        n_rows=n_rows, n_cols=n_cols, blk=blk)

    per_row = pl.pallas_call(
        kernel,
        out_shape=jax.ShapeDtypeStruct((rows_pad, 1), jnp.float32),
        grid=(rows_pad // blk, cols_pad // blk),
        in_specs=[
            pl.BlockSpec((blk, D), lambda i, j: (i, 0)),   # anchor-row features
            pl.BlockSpec((blk, D), lambda i, j: (j, 0)),   # contrast-column features
            pl.BlockSpec((blk, 1), lambda i, j: (i, 0)),   # row labels
            pl.BlockSpec((1, blk), lambda i, j: (0, j)),   # column labels
        ],
        out_specs=pl.BlockSpec((blk, 1), lambda i, j: (i, 0)),
        scratch_shapes=[pltpu.VMEM((blk, 1), jnp.float32) for _ in range(4)],
        compiler_params=pltpu.CompilerParams(
            dimension_semantics=("parallel", "arbitrary")),
    )(feat_pad, feat_pad, row_labels, col_labels)

    # loss.view(anchor_count, batch_size).mean() == mean over all anchor rows.
    return jnp.sum(per_row) / n_rows


def _supcon_ref(features, labels=None, *, temperature=0.07,
                base_temperature=0.07, contrast_mode='all'):
    """Pure-JAX reference mirroring the PyTorch module (bf16 matmul to match
    the kernel's MXU input precision)."""
    B, V, D = features.shape
    if labels is None:
        mask = jnp.eye(B, dtype=jnp.float32)
    else:
        labels = labels.reshape(-1, 1)
        mask = (labels == labels.T).astype(jnp.float32)
    contrast = jnp.transpose(features, (1, 0, 2)).reshape(V * B, D)
    if contrast_mode == 'one':
        anchor, anchor_count = features[:, 0], 1
    else:
        anchor, anchor_count = contrast, V
    logits = jnp.dot(anchor.astype(jnp.bfloat16), contrast.astype(jnp.bfloat16).T,
                     preferred_element_type=jnp.float32) / temperature
    logits = logits - jnp.max(logits, axis=1, keepdims=True)
    n_rows, n_cols = anchor_count * B, V * B
    mask = jnp.tile(mask, (anchor_count, V))
    logits_mask = 1.0 - jax.nn.one_hot(jnp.arange(n_rows), n_cols, dtype=jnp.float32)
    mask = mask * logits_mask
    exp_logits = jnp.exp(logits) * logits_mask
    log_prob = logits - jnp.log(exp_logits.sum(1, keepdims=True))
    mean_log_prob_pos = (mask * log_prob).sum(1) / mask.sum(1)
    loss = -(temperature / base_temperature) * mean_log_prob_pos
    return loss.reshape(anchor_count, B).mean()


if __name__ == "__main__":
    key = jax.random.PRNGKey(0)
    B, V, D = 8, 2, 32  # small shapes: batch=8, 2 views, hidden=32

    k1, _ = jax.random.split(key)
    feats = jax.random.normal(k1, (B, V, D), dtype=jnp.float32)
    # L2-normalize features, as is standard for SupCon inputs.
    feats = feats / jnp.linalg.norm(feats, axis=-1, keepdims=True)
    labels = jnp.array([0, 0, 1, 1, 2, 2, 3, 3], dtype=jnp.int32)

    # supervised, contrast_mode='all'
    loss_all = jax.block_until_ready(supcon_loss(feats, labels=labels))
    ref_all = _supcon_ref(feats, labels, contrast_mode='all')
    assert jnp.allclose(loss_all, ref_all, atol=1e-3, rtol=1e-3), (loss_all, ref_all)

    # supervised, contrast_mode='one'
    loss_one = jax.block_until_ready(
        supcon_loss(feats, labels=labels, contrast_mode='one'))
    ref_one = _supcon_ref(feats, labels, contrast_mode='one')
    assert jnp.allclose(loss_one, ref_one, atol=1e-3, rtol=1e-3), (loss_one, ref_one)

    # unsupervised (SimCLR-style): labels=None -> eye(batch) positives
    loss_unsup = jax.block_until_ready(supcon_loss(feats))
    ref_unsup = _supcon_ref(feats, None, contrast_mode='all')
    assert jnp.allclose(loss_unsup, ref_unsup, atol=1e-3, rtol=1e-3), (loss_unsup, ref_unsup)

    print("KERNEL_OK")
</pallas_src>

<mosaic_0001>
module attributes {stable_mosaic.version = 11 : i64} {
  func.func @_supcon_kernel(%arg0: i32, %arg1: i32, %arg2: memref<128x32xbf16, #tpu.memory_space<vmem>>, %arg3: memref<128x32xbf16, #tpu.memory_space<vmem>>, %arg4: memref<128x1xi32, #tpu.memory_space<vmem>>, %arg5: memref<1x128xi32, #tpu.memory_space<vmem>>, %arg6: memref<128x1xf32, #tpu.memory_space<vmem>>, %arg7: memref<128x1xf32, #tpu.memory_space<vmem>>, %arg8: memref<128x1xf32, #tpu.memory_space<vmem>>, %arg9: memref<128x1xf32, #tpu.memory_space<vmem>>, %arg10: memref<128x1xf32, #tpu.memory_space<vmem>>) attributes {dimension_semantics = [#tpu.dimension_semantics<parallel>, #tpu.dimension_semantics<arbitrary>], iteration_bounds = array<i64: 1, 1>, scalar_prefetch = 0 : i64, scratch_operands = 4 : i64, tpu.core_type = #tpu.core_type<tc>, window_params = [{transform_indices = @transform_0, window_bounds = array<i64: 128, 32>}, {transform_indices = @transform_1, window_bounds = array<i64: 128, 32>}, {transform_indices = @transform_2, window_bounds = array<i64: 128, 1>}, {transform_indices = @transform_3, window_bounds = array<i64: 1, 128>}, {transform_indices = @transform_4, window_bounds = array<i64: 128, 1>}]} {
    %c0_i32 = arith.constant 0 : i32
    %0 = arith.cmpi eq, %arg1, %c0_i32 : i32
    %1 = arith.extui %0 : i1 to i32
    %c0_i32_0 = arith.constant 0 : i32
    %2 = arith.cmpi ne, %1, %c0_i32_0 : i32
    scf.if %2 {
      %cst_36 = arith.constant -1.000000e+30 : f32
      %62 = vector.broadcast %cst_36 : f32 to vector<128x1xf32>
      %c0_37 = arith.constant 0 : index
      %c0_38 = arith.constant 0 : index
      %63 = vector.load %arg7[%c0_37, %c0_38] : memref<128x1xf32, #tpu.memory_space<vmem>>, vector<128x1xf32>
      tpu.vector_store %arg7[%c0_37, %c0_38], %62 {strides = array<i32>} : memref<128x1xf32, #tpu.memory_space<vmem>>, vector<128x1xf32>,
      %cst_39 = arith.constant 0.000000e+00 : f32
      %64 = vector.broadcast %cst_39 : f32 to vector<128x1xf32>
      %c0_40 = arith.constant 0 : index
      %c0_41 = arith.constant 0 : index
      %65 = vector.load %arg8[%c0_40, %c0_41] : memref<128x1xf32, #tpu.memory_space<vmem>>, vector<128x1xf32>
      tpu.vector_store %arg8[%c0_40, %c0_41], %64 {strides = array<i32>} : memref<128x1xf32, #tpu.memory_space<vmem>>, vector<128x1xf32>,
      %cst_42 = arith.constant 0.000000e+00 : f32
      %66 = vector.broadcast %cst_42 : f32 to vector<128x1xf32>
      %c0_43 = arith.constant 0 : index
      %c0_44 = arith.constant 0 : index
      %67 = vector.load %arg9[%c0_43, %c0_44] : memref<128x1xf32, #tpu.memory_space<vmem>>, vector<128x1xf32>
      tpu.vector_store %arg9[%c0_43, %c0_44], %66 {strides = array<i32>} : memref<128x1xf32, #tpu.memory_space<vmem>>, vector<128x1xf32>,
      %cst_45 = arith.constant 0.000000e+00 : f32
      %68 = vector.broadcast %cst_45 : f32 to vector<128x1xf32>
      %c0_46 = arith.constant 0 : index
      %c0_47 = arith.constant 0 : index
      %69 = vector.load %arg10[%c0_46, %c0_47] : memref<128x1xf32, #tpu.memory_space<vmem>>, vector<128x1xf32>
      tpu.vector_store %arg10[%c0_46, %c0_47], %68 {strides = array<i32>} : memref<128x1xf32, #tpu.memory_space<vmem>>, vector<128x1xf32>,
    } else {
    }
    %c0 = arith.constant 0 : index
    %c0_1 = arith.constant 0 : index
    %3 = vector.load %arg2[%c0, %c0_1] : memref<128x32xbf16, #tpu.memory_space<vmem>>, vector<128x32xbf16>
    %c0_2 = arith.constant 0 : index
    %c0_3 = arith.constant 0 : index
    %4 = vector.load %arg3[%c0_2, %c0_3] : memref<128x32xbf16, #tpu.memory_space<vmem>>, vector<128x32xbf16>
    %cst = arith.constant dense<0.000000e+00> : vector<128x128xf32>
    %5 = tpu.matmul %3, %4, %cst {dimension_numbers = #tpu.dot_dimension_numbers<[1], [1], [0], [0], [0, 0, 1, 0], [], []>} : vector<128x32xbf16>, vector<128x32xbf16>, vector<128x128xf32> -> vector<128x128xf32>
    %cst_4 = arith.constant 14.2857141 : f32
    %6 = vector.broadcast %cst_4 : f32 to vector<128x128xf32>
    %7 = arith.mulf %5, %6 : vector<128x128xf32>
    %c128_i32 = arith.constant 128 : i32
    %8 = arith.muli %arg0, %c128_i32 : i32
    %9 = tpu.iota {dimensions = array<i32: 0>} : vector<128x128xi32>
    %10 = vector.broadcast %8 : i32 to vector<128x128xi32>
    %11 = arith.addi %10, %9 : vector<128x128xi32>
    %c128_i32_5 = arith.constant 128 : i32
    %12 = arith.muli %arg1, %c128_i32_5 : i32
    %13 = tpu.iota {dimensions = array<i32: 1>} : vector<128x128xi32>
    %14 = vector.broadcast %12 : i32 to vector<128x128xi32>
    %15 = arith.addi %14, %13 : vector<128x128xi32>
    %c16_i32 = arith.constant 16 : i32
    %16 = vector.broadcast %c16_i32 : i32 to vector<128x128xi32>
    %17 = arith.cmpi slt, %15, %16 : vector<128x128xi32>
    %18 = arith.cmpi ne, %11, %15 : vector<128x128xi32>
    %19 = arith.andi %17, %18 : vector<128x128xi1>
    %c0_6 = arith.constant 0 : index
    %c0_7 = arith.constant 0 : index
    %20 = vector.load %arg4[%c0_6, %c0_7] : memref<128x1xi32, #tpu.memory_space<vmem>>, vector<128x1xi32>
    %c0_8 = arith.constant 0 : index
    %c0_9 = arith.constant 0 : index
    %21 = vector.load %arg5[%c0_8, %c0_9] : memref<1x128xi32, #tpu.memory_space<vmem>>, vector<1x128xi32>
    %22 = vector.broadcast %20 : vector<128x1xi32> to vector<128x128xi32>
    %23 = vector.broadcast %21 : vector<1x128xi32> to vector<128x128xi32>
    %24 = arith.cmpi eq, %22, %23 : vector<128x128xi32>
    %25 = arith.andi %24, %19 : vector<128x128xi1>
    %c0_10 = arith.constant 0 : index
    %c0_11 = arith.constant 0 : index
    %26 = vector.load %arg9[%c0_10, %c0_11] : memref<128x1xf32, #tpu.memory_space<vmem>>, vector<128x1xf32>
    %cst_12 = arith.constant 0.000000e+00 : f32
    %27 = vector.broadcast %cst_12 : f32 to vector<128x128xf32>
    %28 = arith.select %25, %7, %27 : vector<128x128xi1>, vector<128x128xf32>
    %cst_13 = arith.constant dense<0.000000e+00> : vector<128xf32>
    %29 = vector.multi_reduction <add>, %28, %cst_13 [1] : vector<128x128xf32> to vector<128xf32>
    %30 = vector.shape_cast %29 : vector<128xf32> to vector<128x1xf32>
    %31 = arith.addf %26, %30 : vector<128x1xf32>
    %c0_14 = arith.constant 0 : index
    %c0_15 = arith.constant 0 : index
    %32 = vector.load %arg9[%c0_14, %c0_15] : memref<128x1xf32, #tpu.memory_space<vmem>>, vector<128x1xf32>
    tpu.vector_store %arg9[%c0_14, %c0_15], %31 {strides = array<i32>} : memref<128x1xf32, #tpu.memory_space<vmem>>, vector<128x1xf32>,
    %c0_16 = arith.constant 0 : index
    %c0_17 = arith.constant 0 : index
    %33 = vector.load %arg10[%c0_16, %c0_17] : memref<128x1xf32, #tpu.memory_space<vmem>>, vector<128x1xf32>
    %34 = arith.extui %25 : vector<128x128xi1> to vector<128x128xi32>
    %35 = arith.sitofp %34 : vector<128x128xi32> to vector<128x128xf32>
    %cst_18 = arith.constant dense<0.000000e+00> : vector<128xf32>
    %36 = vector.multi_reduction <add>, %35, %cst_18 [1] : vector<128x128xf32> to vector<128xf32>
    %37 = vector.shape_cast %36 : vector<128xf32> to vector<128x1xf32>
    %38 = arith.addf %33, %37 : vector<128x1xf32>
    %c0_19 = arith.constant 0 : index
    %c0_20 = arith.constant 0 : index
    %39 = vector.load %arg10[%c0_19, %c0_20] : memref<128x1xf32, #tpu.memory_space<vmem>>, vector<128x1xf32>
    tpu.vector_store %arg10[%c0_19, %c0_20], %38 {strides = array<i32>} : memref<128x1xf32, #tpu.memory_space<vmem>>, vector<128x1xf32>,
    %cst_21 = arith.constant -1.000000e+30 : f32
    %40 = vector.broadcast %cst_21 : f32 to vector<128x128xf32>
    %41 = arith.select %19, %7, %40 : vector<128x128xi1>, vector<128x128xf32>
    %c0_22 = arith.constant 0 : index
    %c0_23 = arith.constant 0 : index
    %42 = vector.load %arg7[%c0_22, %c0_23] : memref<128x1xf32, #tpu.memory_space<vmem>>, vector<128x1xf32>
    %cst_24 = arith.constant dense<0xFF800000> : vector<128xf32>
    %43 = vector.multi_reduction <maximumf>, %41, %cst_24 [1] : vector<128x128xf32> to vector<128xf32>
    %44 = vector.shape_cast %43 : vector<128xf32> to vector<128x1xf32>
    %45 = arith.maximumf %42, %44 : vector<128x1xf32>
    %c0_25 = arith.constant 0 : index
    %c0_26 = arith.constant 0 : index
    %46 = vector.load %arg8[%c0_25, %c0_26] : memref<128x1xf32, #tpu.memory_space<vmem>>, vector<128x1xf32>
    %c0_27 = arith.constant 0 : index
    %c0_28 = arith.constant 0 : index
    %47 = vector.load %arg7[%c0_27, %c0_28] : memref<128x1xf32, #tpu.memory_space<vmem>>, vector<128x1xf32>
    %48 = arith.subf %47, %45 : vector<128x1xf32>
    %49 = math.exp %48 : vector<128x1xf32>
    %50 = arith.mulf %46, %49 : vector<128x1xf32>
    %51 = vector.broadcast %45 : vector<128x1xf32> to vector<128x128xf32>
    %52 = arith.subf %41, %51 : vector<128x128xf32>
    %53 = math.exp %52 : vector<128x128xf32>
    %cst_29 = arith.constant dense<0.000000e+00> : vector<128xf32>
    %54 = vector.multi_reduction <add>, %53, %cst_29 [1] : vector<128x128xf32> to vector<128xf32>
    %55 = vector.shape_cast %54 : vector<128xf32> to vector<128x1xf32>
    %56 = arith.addf %50, %55 : vector<128x1xf32>
    %c0_30 = arith.constant 0 : index
    %c0_31 = arith.constant 0 : index
    %57 = vector.load %arg8[%c0_30, %c0_31] : memref<128x1xf32, #tpu.memory_space<vmem>>, vector<128x1xf32>
    tpu.vector_store %arg8[%c0_30, %c0_31], %56 {strides = array<i32>} : memref<128x1xf32, #tpu.memory_space<vmem>>, vector<128x1xf32>,
    %c0_32 = arith.constant 0 : index
    %c0_33 = arith.constant 0 : index
    %58 = vector.load %arg7[%c0_32, %c0_33] : memref<128x1xf32, #tpu.memory_space<vmem>>, vector<128x1xf32>
    tpu.vector_store %arg7[%c0_32, %c0_33], %45 {strides = array<i32>} : memref<128x1xf32, #tpu.memory_space<vmem>>, vector<128x1xf32>,
    %c0_i32_34 = arith.constant 0 : i32
    %59 = arith.cmpi eq, %arg1, %c0_i32_34 : i32
    %60 = arith.extui %59 : i1 to i32
    %c0_i32_35 = arith.constant 0 : i32
    %61 = arith.cmpi ne, %60, %c0_i32_35 : i32
    scf.if %61 {
      %c0_36 = arith.constant 0 : index
      %c0_37 = arith.constant 0 : index
      %62 = vector.load %arg7[%c0_36, %c0_37] : memref<128x1xf32, #tpu.memory_space<vmem>>, vector<128x1xf32>
      %c0_38 = arith.constant 0 : index
      %c0_39 = arith.constant 0 : index
      %63 = vector.load %arg8[%c0_38, %c0_39] : memref<128x1xf32, #tpu.memory_space<vmem>>, vector<128x1xf32>
      %64 = math.log %63 : vector<128x1xf32>
      %65 = arith.addf %62, %64 : vector<128x1xf32>
      %c0_40 = arith.constant 0 : index
      %c0_41 = arith.constant 0 : index
      %66 = vector.load %arg10[%c0_40, %c0_41] : memref<128x1xf32, #tpu.memory_space<vmem>>, vector<128x1xf32>
      %c0_42 = arith.constant 0 : index
      %c0_43 = arith.constant 0 : index
      %67 = vector.load %arg9[%c0_42, %c0_43] : memref<128x1xf32, #tpu.memory_space<vmem>>, vector<128x1xf32>
      %cst_44 = arith.constant 1.000000e+00 : f32
      %68 = vector.broadcast %cst_44 : f32 to vector<128x1xf32>
      %69 = arith.maximumf %66, %68 : vector<128x1xf32>
      %70 = arith.divf %67, %69 : vector<128x1xf32>
      %71 = arith.subf %70, %65 : vector<128x1xf32>
      %cst_45 = arith.constant -1.000000e+00 : f32
      %72 = vector.broadcast %cst_45 : f32 to vector<128x1xf32>
      %73 = arith.mulf %72, %71 : vector<128x1xf32>
      %74 = vector.extract_strided_slice %11 {offsets = [0, 0], sizes = [128, 1], strides = [1, 1]} : vector<128x128xi32> to vector<128x1xi32>
      %c16_i32_46 = arith.constant 16 : i32
      %75 = vector.broadcast %c16_i32_46 : i32 to vector<128x1xi32>
      %76 = arith.cmpi slt, %74, %75 : vector<128x1xi32>
      %cst_47 = arith.constant 0.000000e+00 : f32
      %77 = vector.broadcast %cst_47 : f32 to vector<128x1xf32>
      %78 = arith.cmpf ogt, %66, %77 : vector<128x1xf32>
      %79 = arith.andi %76, %78 : vector<128x1xi1>
      %cst_48 = arith.constant 0.000000e+00 : f32
      %80 = vector.broadcast %cst_48 : f32 to vector<128x1xf32>
      %81 = arith.select %79, %73, %80 : vector<128x1xi1>, vector<128x1xf32>
      %c0_49 = arith.constant 0 : index
      %c0_50 = arith.constant 0 : index
      %82 = vector.load %arg6[%c0_49, %c0_50] : memref<128x1xf32, #tpu.memory_space<vmem>>, vector<128x1xf32>
      tpu.vector_store %arg6[%c0_49, %c0_50], %81 {strides = array<i32>} : memref<128x1xf32, #tpu.memory_space<vmem>>, vector<128x1xf32>,
    } else {
    }
    return
  }
  func.func @transform_0(%arg0: i32, %arg1: i32) -> (i32, i32) {
    %c0_i32 = arith.constant 0 : i32
    %c0_i32_0 = arith.constant 0 : i32
    return %arg0, %c0_i32 : i32, i32
  }
  func.func @transform_1(%arg0: i32, %arg1: i32) -> (i32, i32) {
    %c0_i32 = arith.constant 0 : i32
    %c0_i32_0 = arith.constant 0 : i32
    return %arg1, %c0_i32 : i32, i32
  }
  func.func @transform_2(%arg0: i32, %arg1: i32) -> (i32, i32) {
    %c0_i32 = arith.constant 0 : i32
    %c0_i32_0 = arith.constant 0 : i32
    return %arg0, %c0_i32 : i32, i32
  }
  func.func @transform_3(%arg0: i32, %arg1: i32) -> (i32, i32) {
    %c0_i32 = arith.constant 0 : i32
    %c0_i32_0 = arith.constant 0 : i32
    return %c0_i32, %arg1 : i32, i32
  }
  func.func @transform_4(%arg0: i32, %arg1: i32) -> (i32, i32) {
    %c0_i32 = arith.constant 0 : i32
    %c0_i32_0 = arith.constant 0 : i32
    return %arg0, %c0_i32 : i32, i32
  }
}

</mosaic_0001>

<llo_original>
// kernel: tpu_custom_call.1
$region0: #{tpu_custom_call.1}
  #allocation0 [shape = 'u32[]', space=smem, size = 0x4, offset = 0x4, fixed_abs, tag = 'smem constant byte address 0x4 - core index']
  #allocation1 [shape = 'u32[144,128]{1,0:T(1,128)}', space=vmem, size = 0x12000, scoped, tag = 'internal scratch']
  #allocation2 [shape = 'f32[128,1]{1,0:T(8,128)}', space=vmem, size = 0x10000, scoped, tag = 'scratch operand']
  #allocation3 [shape = 'f32[128,1]{1,0:T(8,128)}', space=vmem, size = 0x10000, scoped, tag = 'scratch operand']
  #allocation4 [shape = 'f32[128,1]{1,0:T(8,128)}', space=vmem, size = 0x10000, scoped, tag = 'scratch operand']
  #allocation5 [shape = 'f32[128,1]{1,0:T(8,128)}', space=vmem, size = 0x10000, scoped, tag = 'scratch operand']
  %s0 = inlined_call_operand.vmem [shape: bf16[128,32], index: 0, kind: input, shape index: {}]
  %s1 = inlined_call_operand.vmem [shape: bf16[128,32], index: 1, kind: input, shape index: {}]
  %s2 = inlined_call_operand.vmem [shape: s32[128,1], index: 2, kind: input, shape index: {}]
  %s3 = inlined_call_operand.vmem [shape: s32[1,128], index: 3, kind: input, shape index: {}]
  %s4 = inlined_call_operand.vmem [shape: f32[128,1], index: 4, kind: output, shape index: {}]
  %s5 = sld [smem:[#allocation0]]
  $region34: #{tpu_custom_call.1} parent=0
    _
  %s7 = ssub.s32 1, %s5
  %s8 = scalar_select 0, %s7, %s5
  // Predicated region
  $region2: #{tpu_custom_call.1} parent=0 // pred_check
    _
  $region3: #{tpu_custom_call.1} parent=0 // pred_check_branch
    %10 = sbr.rel (0) target = $region5
  $region4: #{tpu_custom_call.1} parent=0 // pred_region
    _
  $region5: #{tpu_custom_call.1} parent=0 // pred_fallthru
    _
  // Predicated region
  $region6: #{tpu_custom_call.1} parent=0 // pred_check
    _
  $region7: #{tpu_custom_call.1} parent=0 // pred_check_branch
    %12 = sbr.rel (0) target = $region9
  $region8: #{tpu_custom_call.1} parent=0 // pred_region
    _
  $region9: #{tpu_custom_call.1} parent=0 // pred_fallthru
    _
  // Predicated region
  $region10: #{tpu_custom_call.1} parent=0 // pred_check
    _
  $region11: #{tpu_custom_call.1} parent=0 // pred_check_branch
    %14 = sbr.rel (0) target = $region13
  $region12: #{tpu_custom_call.1} parent=0 // pred_region
    _
  $region13: #{tpu_custom_call.1} parent=0 // pred_fallthru
    _
  // Predicated region
  $region14: #{tpu_custom_call.1} parent=0 // pred_check
    _
  $region15: #{tpu_custom_call.1} parent=0 // pred_check_branch
    %16 = sbr.rel (0) target = $region17
  $region16: #{tpu_custom_call.1} parent=0 // pred_region
    _
  $region17: #{tpu_custom_call.1} parent=0 // pred_fallthru
    _
  %p18 = scmp.eq.s32.totalorder 0, 0
  // Predicated region
  $region18: #{tpu_custom_call.1} parent=0 // pred_check
    %p19 = pneg %p18
  $region19: #{tpu_custom_call.1} parent=0 // pred_check_branch
    %21 = sbr.rel (%p19) target = $region21
  $region20: #{tpu_custom_call.1} parent=0 // pred_region
    %vm22 = vcmask 7168
    %23 = vst.msk [vmem:[#allocation2] sm:$0xff] %vm22, -1e+30
    %24 = vst.msk [vmem:[#allocation2 + $0x8] sm:$0xff] %vm22, -1e+30
    %25 = vst.msk [vmem:[#allocation2 + $0x10] sm:$0xff] %vm22, -1e+30
    %26 = vst.msk [vmem:[#allocation2 + $0x18] sm:$0xff] %vm22, -1e+30
    %27 = vst.msk [vmem:[#allocation2 + $0x20] sm:$0xff] %vm22, -1e+30
    %28 = vst.msk [vmem:[#allocation2 + $0x28] sm:$0xff] %vm22, -1e+30
    %29 = vst.msk [vmem:[#allocation2 + $0x30] sm:$0xff] %vm22, -1e+30
    %30 = vst.msk [vmem:[#allocation2 + $0x38] sm:$0xff] %vm22, -1e+30
    %31 = vst.msk [vmem:[#allocation2 + $0x40] sm:$0xff] %vm22, -1e+30
    %32 = vst.msk [vmem:[#allocation2 + $0x48] sm:$0xff] %vm22, -1e+30
    %33 = vst.msk [vmem:[#allocation2 + $0x50] sm:$0xff] %vm22, -1e+30
    %34 = vst.msk [vmem:[#allocation2 + $0x58] sm:$0xff] %vm22, -1e+30
    %35 = vst.msk [vmem:[#allocation2 + $0x60] sm:$0xff] %vm22, -1e+30
    %36 = vst.msk [vmem:[#allocation2 + $0x68] sm:$0xff] %vm22, -1e+30
    %37 = vst.msk [vmem:[#allocation2 + $0x70] sm:$0xff] %vm22, -1e+30
    %38 = vst.msk [vmem:[#allocation2 + $0x78] sm:$0xff] %vm22, -1e+30
    %39 = vst.msk [vmem:[#allocation3] sm:$0xff] %vm22, 0.0
    %40 = vst.msk [vmem:[#allocation3 + $0x8] sm:$0xff] %vm22, 0.0
    %41 = vst.msk [vmem:[#allocation3 + $0x10] sm:$0xff] %vm22, 0.0
    %42 = vst.msk [vmem:[#allocation3 + $0x18] sm:$0xff] %vm22, 0.0
    %43 = vst.msk [vmem:[#allocation3 + $0x20] sm:$0xff] %vm22, 0.0
    %44 = vst.msk [vmem:[#allocation3 + $0x28] sm:$0xff] %vm22, 0.0
    %45 = vst.msk [vmem:[#allocation3 + $0x30] sm:$0xff] %vm22, 0.0
    %46 = vst.msk [vmem:[#allocation3 + $0x38] sm:$0xff] %vm22, 0.0
    %47 = vst.msk [vmem:[#allocation3 + $0x40] sm:$0xff] %vm22, 0.0
    %48 = vst.msk [vmem:[#allocation3 + $0x48] sm:$0xff] %vm22, 0.0
    %49 = vst.msk [vmem:[#allocation3 + $0x50] sm:$0xff] %vm22, 0.0
    %50 = vst.msk [vmem:[#allocation3 + $0x58] sm:$0xff] %vm22, 0.0
    %51 = vst.msk [vmem:[#allocation3 + $0x60] sm:$0xff] %vm22, 0.0
    %52 = vst.msk [vmem:[#allocation3 + $0x68] sm:$0xff] %vm22, 0.0
    %53 = vst.msk [vmem:[#allocation3 + $0x70] sm:$0xff] %vm22, 0.0
    %54 = vst.msk [vmem:[#allocation3 + $0x78] sm:$0xff] %vm22, 0.0
    %55 = vst.msk [vmem:[#allocation4] sm:$0xff] %vm22, 0.0
    %56 = vst.msk [vmem:[#allocation4 + $0x8] sm:$0xff] %vm22, 0.0
    %57 = vst.msk [vmem:[#allocation4 + $0x10] sm:$0xff] %vm22, 0.0
    %58 = vst.msk [vmem:[#allocation4 + $0x18] sm:$0xff] %vm22, 0.0
    %59 = vst.msk [vmem:[#allocation4 + $0x20] sm:$0xff] %vm22, 0.0
    %60 = vst.msk [vmem:[#allocation4 + $0x28] sm:$0xff] %vm22, 0.0
    %61 = vst.msk [vmem:[#allocation4 + $0x30] sm:$0xff] %vm22, 0.0
    %62 = vst.msk [vmem:[#allocation4 + $0x38] sm:$0xff] %vm22, 0.0
    %63 = vst.msk [vmem:[#allocation4 + $0x40] sm:$0xff] %vm22, 0.0
    %64 = vst.msk [vmem:[#allocation4 + $0x48] sm:$0xff] %vm22, 0.0
    %65 = vst.msk [vmem:[#allocation4 + $0x50] sm:$0xff] %vm22, 0.0
    %66 = vst.msk [vmem:[#allocation4 + $0x58] sm:$0xff] %vm22, 0.0
    %67 = vst.msk [vmem:[#allocation4 + $0x60] sm:$0xff] %vm22, 0.0
    %68 = vst.msk [vmem:[#allocation4 + $0x68] sm:$0xff] %vm22, 0.0
    %69 = vst.msk [vmem:[#allocation4 + $0x70] sm:$0xff] %vm22, 0.0
    %70 = vst.msk [vmem:[#allocation4 + $0x78] sm:$0xff] %vm22, 0.0
    %71 = vst.msk [vmem:[#allocation5] sm:$0xff] %vm22, 0.0
    %72 = vst.msk [vmem:[#allocation5 + $0x8] sm:$0xff] %vm22, 0.0
    %73 = vst.msk [vmem:[#allocation5 + $0x10] sm:$0xff] %vm22, 0.0
    %74 = vst.msk [vmem:[#allocation5 + $0x18] sm:$0xff] %vm22, 0.0
    %75 = vst.msk [vmem:[#allocation5 + $0x20] sm:$0xff] %vm22, 0.0
    %76 = vst.msk [vmem:[#allocation5 + $0x28] sm:$0xff] %vm22, 0.0
    %77 = vst.msk [vmem:[#allocation5 + $0x30] sm:$0xff] %vm22, 0.0
    %78 = vst.msk [vmem:[#allocation5 + $0x38] sm:$0xff] %vm22, 0.0
    %79 = vst.msk [vmem:[#allocation5 + $0x40] sm:$0xff] %vm22, 0.0
    %80 = vst.msk [vmem:[#allocation5 + $0x48] sm:$0xff] %vm22, 0.0
    %81 = vst.msk [vmem:[#allocation5 + $0x50] sm:$0xff] %vm22, 0.0
    %82 = vst.msk [vmem:[#allocation5 + $0x58] sm:$0xff] %vm22, 0.0
    %83 = vst.msk [vmem:[#allocation5 + $0x60] sm:$0xff] %vm22, 0.0
    %84 = vst.msk [vmem:[#allocation5 + $0x68] sm:$0xff] %vm22, 0.0
    %85 = vst.msk [vmem:[#allocation5 + $0x70] sm:$0xff] %vm22, 0.0
    %86 = vst.msk [vmem:[#allocation5 + $0x78] sm:$0xff] %vm22, 0.0
  $region21: #{tpu_custom_call.1} parent=0 // pred_fallthru
    _
  %v87 = vld [vmem:[%s0] sm:$0xf]
  %v88 = vld [vmem:[%s0 + $0x4] sm:$0xf]
  %v89 = vld [vmem:[%s0 + $0x8] sm:$0xf]
  %v90 = vld [vmem:[%s0 + $0xc] sm:$0xf]
  %v91 = vld [vmem:[%s0 + $0x10] sm:$0xf]
  %v92 = vld [vmem:[%s0 + $0x14] sm:$0xf]
  %v93 = vld [vmem:[%s0 + $0x18] sm:$0xf]
  %v94 = vld [vmem:[%s0 + $0x1c] sm:$0xf]
  %v95 = vld [vmem:[%s0 + $0x20] sm:$0xf]
  %v96 = vld [vmem:[%s0 + $0x24] sm:$0xf]
  %v97 = vld [vmem:[%s0 + $0x28] sm:$0xf]
  %v98 = vld [vmem:[%s0 + $0x2c] sm:$0xf]
  %v99 = vld [vmem:[%s0 + $0x30] sm:$0xf]
  %v100 = vld [vmem:[%s0 + $0x34] sm:$0xf]
  %v101 = vld [vmem:[%s0 + $0x38] sm:$0xf]
  %v102 = vld [vmem:[%s0 + $0x3c] sm:$0xf]
  %v103 = vld [vmem:[%s1] sm:$0xf]
  %v104 = vld [vmem:[%s1 + $0x4] sm:$0xf]
  %v105 = vld [vmem:[%s1 + $0x8] sm:$0xf]
  %v106 = vld [vmem:[%s1 + $0xc] sm:$0xf]
  %v107 = vld [vmem:[%s1 + $0x10] sm:$0xf]
  %v108 = vld [vmem:[%s1 + $0x14] sm:$0xf]
  %v109 = vld [vmem:[%s1 + $0x18] sm:$0xf]
  %v110 = vld [vmem:[%s1 + $0x1c] sm:$0xf]
  %v111 = vld [vmem:[%s1 + $0x20] sm:$0xf]
  %v112 = vld [vmem:[%s1 + $0x24] sm:$0xf]
  %v113 = vld [vmem:[%s1 + $0x28] sm:$0xf]
  %v114 = vld [vmem:[%s1 + $0x2c] sm:$0xf]
  %v115 = vld [vmem:[%s1 + $0x30] sm:$0xf]
  %v116 = vld [vmem:[%s1 + $0x34] sm:$0xf]
  %v117 = vld [vmem:[%s1 + $0x38] sm:$0xf]
  %v118 = vld [vmem:[%s1 + $0x3c] sm:$0xf]
  %v135 = vunpack.c.l.b16 %v87
  %v136 = vunpack.c.l.b16 %v88
  %v137 = vunpack.c.l.b16 %v89
  %v138 = vunpack.c.l.b16 %v90
  %v139 = vunpack.c.l.b16 %v91
  %v140 = vunpack.c.l.b16 %v92
  %v141 = vunpack.c.l.b16 %v93
  %v142 = vunpack.c.l.b16 %v94
  %v143 = vunpack.c.l.b16 %v95
  %v144 = vunpack.c.l.b16 %v96
  %v145 = vunpack.c.l.b16 %v97
  %v146 = vunpack.c.l.b16 %v98
  %v147 = vunpack.c.l.b16 %v99
  %v148 = vunpack.c.l.b16 %v100
  %v149 = vunpack.c.l.b16 %v101
  %v150 = vunpack.c.l.b16 %v102
  %v151 = vpack.c.b16 %v136, %v135
  %v152 = vpack.c.b16 %v138, %v137
  %v153 = vpack.c.b16 %v140, %v139
  %v154 = vpack.c.b16 %v142, %v141
  %v155 = vpack.c.b16 %v144, %v143
  %v156 = vpack.c.b16 %v146, %v145
  %v157 = vpack.c.b16 %v148, %v147
  %v158 = vpack.c.b16 %v150, %v149
  %v175 = vunpack.c.l.b16 %v103
  %v176 = vunpack.c.l.b16 %v104
  %v177 = vunpack.c.l.b16 %v105
  %v178 = vunpack.c.l.b16 %v106
  %v179 = vunpack.c.l.b16 %v107
  %v180 = vunpack.c.l.b16 %v108
  %v181 = vunpack.c.l.b16 %v109
  %v182 = vunpack.c.l.b16 %v110
  %v183 = vunpack.c.l.b16 %v111
  %v184 = vunpack.c.l.b16 %v112
  %v185 = vunpack.c.l.b16 %v113
  %v186 = vunpack.c.l.b16 %v114
  %v187 = vunpack.c.l.b16 %v115
  %v188 = vunpack.c.l.b16 %v116
  %v189 = vunpack.c.l.b16 %v117
  %v190 = vunpack.c.l.b16 %v118
  %v191 = vpack.c.b16 %v176, %v175
  %v192 = vpack.c.b16 %v178, %v177
  %v193 = vpack.c.b16 %v180, %v179
  %v194 = vpack.c.b16 %v182, %v181
  %v195 = vpack.c.b16 %v184, %v183
  %v196 = vpack.c.b16 %v186, %v185
  %v197 = vpack.c.b16 %v188, %v187
  %v198 = vpack.c.b16 %v190, %v189
  %vm199 = vcmask 261120
  %v201 = vsel %vm199, %v151, 0
  %v204 = vsel %vm199, %v152, 0
  %v207 = vsel %vm199, %v153, 0
  %v210 = vsel %vm199, %v154, 0
  %v213 = vsel %vm199, %v155, 0
  %v216 = vsel %vm199, %v156, 0
  %v219 = vsel %vm199, %v157, 0
  %v222 = vsel %vm199, %v158, 0
  %v225 = vsel %vm199, %v191, 0
  %v228 = vsel %vm199, %v192, 0
  %v231 = vsel %vm199, %v193, 0
  %v234 = vsel %vm199, %v194, 0
  %v237 = vsel %vm199, %v195, 0
  %v240 = vsel %vm199, %v196, 0
  %v243 = vsel %vm199, %v197, 0
  %v246 = vsel %vm199, %v198, 0
  %248 = vmatprep.subr.bf16.mxu0 0
  %249 = vmatpush1.bf16.xpose.msra.mxu0 %v246
  %250 = vmatprep.subr.bf16.mxu0 0
  %251 = vmatpush1.bf16.xpose.msra.mxu0 %v243
  %252 = vmatprep.subr.bf16.mxu0 0
  %253 = vmatpush1.bf16.xpose.msra.mxu0 %v240
  %254 = vmatprep.subr.bf16.mxu0 0
  %255 = vmatpush1.bf16.xpose.msra.mxu0 %v237
  %256 = vmatprep.subr.bf16.mxu0 0
  %257 = vmatpush1.bf16.xpose.msra.mxu0 %v234
  %258 = vmatprep.subr.bf16.mxu0 0
  %259 = vmatpush1.bf16.xpose.msra.mxu0 %v231
  %260 = vmatprep.subr.bf16.mxu0 0
  %261 = vmatpush1.bf16.xpose.msra.mxu0 %v228
  %262 = vmatprep.subr.bf16.mxu0 0
  %263 = vmatpush1.bf16.xpose.msra.mxu0 %v225
  %264 = vmatprep.subr.bf16.mxu0 0
  %265 = vmatpush2.bf16.xpose.msra.mxu0 0
  %266 = vmatprep.subr.bf16.mxu0 0
  %267 = vmatpush2.bf16.xpose.msra.mxu0 0
  %268 = vmatprep.subr.bf16.mxu0 0
  %269 = vmatpush2.bf16.xpose.msra.mxu0 0
  %270 = vmatprep.subr.bf16.mxu0 0
  %271 = vmatpush2.bf16.xpose.msra.mxu0 0
  %272 = vmatprep.subr.bf16.mxu0 0
  %273 = vmatpush2.bf16.xpose.msra.mxu0 0
  %274 = vmatprep.subr.bf16.mxu0 0
  %275 = vmatpush2.bf16.xpose.msra.mxu0 0
  %276 = vmatprep.subr.bf16.mxu0 0
  %277 = vmatpush2.bf16.xpose.msra.mxu0 0
  %278 = vmatprep.subr.bf16.mxu0 0
  %279 = vmatpush2.bf16.xpose.msra.mxu0 0
  %280 = vmatprep.mubr.bf16.mxu0 0
  %281 = vmatmul.mubr.bf16.gmra.mxu0 %v201
  %v282 = vpop.f32.mrf.mxu0
  %v283 = vadd.f32 0.0, %v282
  %v284 = vpop.f32.mrf.mxu0
  %v285 = vpop.f32.mrf.mxu0
  %v286 = vadd.f32 0.0, %v285
  %v287 = vpop.f32.mrf.mxu0
  %288 = vmatprep.mubr.bf16.mxu0 0
  %289 = vmatmul.mubr.bf16.gmra.mxu0 %v204
  %v290 = vpop.f32.mrf.mxu0
  %v291 = vadd.f32 0.0, %v290
  %v292 = vpop.f32.mrf.mxu0
  %v293 = vpop.f32.mrf.mxu0
  %v294 = vadd.f32 0.0, %v293
  %v295 = vpop.f32.mrf.mxu0
  %296 = vmatprep.mubr.bf16.mxu0 0
  %297 = vmatmul.mubr.bf16.gmra.mxu0 %v207
  %v298 = vpop.f32.mrf.mxu0
  %v299 = vadd.f32 0.0, %v298
  %v300 = vpop.f32.mrf.mxu0
  %v301 = vpop.f32.mrf.mxu0
  %v302 = vadd.f32 0.0, %v301
  %v303 = vpop.f32.mrf.mxu0
  %304 = vmatprep.mubr.bf16.mxu0 0
  %305 = vmatmul.mubr.bf16.gmra.mxu0 %v210
  %v306 = vpop.f32.mrf.mxu0
  %v307 = vadd.f32 0.0, %v306
  %v308 = vpop.f32.mrf.mxu0
  %v309 = vpop.f32.mrf.mxu0
  %v310 = vadd.f32 0.0, %v309
  %v311 = vpop.f32.mrf.mxu0
  %312 = vmatprep.mubr.bf16.mxu0 0
  %313 = vmatmul.mubr.bf16.gmra.mxu0 %v213
  %v314 = vpop.f32.mrf.mxu0
  %v315 = vadd.f32 0.0, %v314
  %v316 = vpop.f32.mrf.mxu0
  %v317 = vpop.f32.mrf.mxu0
  %v318 = vadd.f32 0.0, %v317
  %v319 = vpop.f32.mrf.mxu0
  %320 = vmatprep.mubr.bf16.mxu0 0
  %321 = vmatmul.mubr.bf16.gmra.mxu0 %v216
  %v322 = vpop.f32.mrf.mxu0
  %v323 = vadd.f32 0.0, %v322
  %v324 = vpop.f32.mrf.mxu0
  %v325 = vpop.f32.mrf.mxu0
  %v326 = vadd.f32 0.0, %v325
  %v327 = vpop.f32.mrf.mxu0
  %328 = vmatprep.mubr.bf16.mxu0 0
  %329 = vmatmul.mubr.bf16.gmra.mxu0 %v219
  %v330 = vpop.f32.mrf.mxu0
  %v331 = vadd.f32 0.0, %v330
  %v332 = vpop.f32.mrf.mxu0
  %v333 = vpop.f32.mrf.mxu0
  %v334 = vadd.f32 0.0, %v333
  %v335 = vpop.f32.mrf.mxu0
  %336 = vmatprep.mubr.bf16.mxu0 0
  %337 = vmatmul.mubr.bf16.gmra.mxu0 %v222
  %v338 = vpop.f32.mrf.mxu0
  %v339 = vadd.f32 0.0, %v338
  %v340 = vpop.f32.mrf.mxu0
  %v341 = vpop.f32.mrf.mxu0
  %v342 = vadd.f32 0.0, %v341
  %v343 = vpop.f32.mrf.mxu0
  %344 = vdwg.mxu0
  %v345 = vmul.f32 %v283, 14.285714
  %v346 = vmul.f32 %v286, 14.285714
  %v347 = vmul.f32 %v291, 14.285714
  %v348 = vmul.f32 %v294, 14.285714
  %v349 = vmul.f32 %v299, 14.285714
  %v350 = vmul.f32 %v302, 14.285714
  %v351 = vmul.f32 %v307, 14.285714
  %v352 = vmul.f32 %v310, 14.285714
  %v353 = vmul.f32 %v315, 14.285714
  %v354 = vmul.f32 %v318, 14.285714
  %v355 = vmul.f32 %v323, 14.285714
  %v356 = vmul.f32 %v326, 14.285714
  %v357 = vmul.f32 %v331, 14.285714
  %v358 = vmul.f32 %v334, 14.285714
  %v359 = vmul.f32 %v339, 14.285714
  %v360 = vmul.f32 %v342, 14.285714
  %s361 = smul.u32 0, 128
  %v362 = vlaneseq
  %v363 = vshrl.u32 %v362, 7
  %v364 = vadd.s32 %v363, 8
  %v365 = vadd.s32 %v363, 16
  %v366 = vadd.s32 %v363, 24
  %v367 = vadd.s32 %v363, 32
  %v368 = vadd.s32 %v363, 40
  %v369 = vadd.s32 %v363, 48
  %v370 = vadd.s32 %v363, 56
  %v371 = vadd.s32 %v363, 64
  %v372 = vadd.s32 %v363, 72
  %v373 = vadd.s32 %v363, 80
  %v374 = vadd.s32 %v363, 88
  %v375 = vadd.s32 %v363, 96
  %v376 = vadd.s32 %v363, 104
  %v377 = vadd.s32 %v363, 112
  %v378 = vadd.s32 %v363, 120
  %v379 = vstv %s361
  %v380 = vadd.s32 %v379, %v363
  %v381 = vadd.s32 %v379, %v364
  %v382 = vadd.s32 %v379, %v365
  %v383 = vadd.s32 %v379, %v366
  %v384 = vadd.s32 %v379, %v367
  %v385 = vadd.s32 %v379, %v368
  %v386 = vadd.s32 %v379, %v369
  %v387 = vadd.s32 %v379, %v370
  %v388 = vadd.s32 %v379, %v371
  %v389 = vadd.s32 %v379, %v372
  %v390 = vadd.s32 %v379, %v373
  %v391 = vadd.s32 %v379, %v374
  %v392 = vadd.s32 %v379, %v375
  %v393 = vadd.s32 %v379, %v376
  %v394 = vadd.s32 %v379, %v377
  %v395 = vadd.s32 %v379, %v378
  %s396 = smul.u32 0, 128
  %v397 = vlaneseq
  %v398 = vand.u32 %v397, 127
  %v399 = vstv %s396
  %v400 = vadd.s32 %v399, %v398
  %vm401 = vcmp.lt.s32.totalorder %v400, 16
  %vm402 = vcmp.ne.s32.totalorder %v380, %v400
  %vm403 = vcmp.ne.s32.totalorder %v381, %v400
  %vm404 = vcmp.ne.s32.totalorder %v382, %v400
  %vm405 = vcmp.ne.s32.totalorder %v383, %v400
  %vm406 = vcmp.ne.s32.totalorder %v384, %v400
  %vm407 = vcmp.ne.s32.totalorder %v385, %v400
  %vm408 = vcmp.ne.s32.totalorder %v386, %v400
  %vm409 = vcmp.ne.s32.totalorder %v387, %v400
  %vm410 = vcmp.ne.s32.totalorder %v388, %v400
  %vm411 = vcmp.ne.s32.totalorder %v389, %v400
  %vm412 = vcmp.ne.s32.totalorder %v390, %v400
  %vm413 = vcmp.ne.s32.totalorder %v391, %v400
  %vm414 = vcmp.ne.s32.totalorder %v392, %v400
  %vm415 = vcmp.ne.s32.totalorder %v393, %v400
  %vm416 = vcmp.ne.s32.totalorder %v394, %v400
  %vm417 = vcmp.ne.s32.totalorder %v395, %v400
  %vm418 = vmand %vm401, %vm402
  %vm419 = vmand %vm401, %vm403
  %vm420 = vmand %vm401, %vm404
  %vm421 = vmand %vm401, %vm405
  %vm422 = vmand %vm401, %vm406
  %vm423 = vmand %vm401, %vm407
  %vm424 = vmand %vm401, %vm408
  %vm425 = vmand %vm401, %vm409
  %vm426 = vmand %vm401, %vm410
  %vm427 = vmand %vm401, %vm411
  %vm428 = vmand %vm401, %vm412
  %vm429 = vmand %vm401, %vm413
  %vm430 = vmand %vm401, %vm414
  %vm431 = vmand %vm401, %vm415
  %vm432 = vmand %vm401, %vm416
  %vm433 = vmand %vm401, %vm417
  %v434 = vld [vmem:[%s2] sm:$0xff]
  %v435 = vld [vmem:[%s2 + $0x8] sm:$0xff]
  %v436 = vld [vmem:[%s2 + $0x10] sm:$0xff]
  %v437 = vld [vmem:[%s2 + $0x18] sm:$0xff]
  %v438 = vld [vmem:[%s2 + $0x20] sm:$0xff]
  %v439 = vld [vmem:[%s2 + $0x28] sm:$0xff]
  %v440 = vld [vmem:[%s2 + $0x30] sm:$0xff]
  %v441 = vld [vmem:[%s2 + $0x38] sm:$0xff]
  %v442 = vld [vmem:[%s2 + $0x40] sm:$0xff]
  %v443 = vld [vmem:[%s2 + $0x48] sm:$0xff]
  %v444 = vld [vmem:[%s2 + $0x50] sm:$0xff]
  %v445 = vld [vmem:[%s2 + $0x58] sm:$0xff]
  %v446 = vld [vmem:[%s2 + $0x60] sm:$0xff]
  %v447 = vld [vmem:[%s2 + $0x68] sm:$0xff]
  %v448 = vld [vmem:[%s2 + $0x70] sm:$0xff]
  %v449 = vld [vmem:[%s2 + $0x78] sm:$0xff]
  %v450 = vld [vmem:[%s3] sm:$0x1]
  %451 = vset.pattern.permute.xlu0 0
  %452 = vperm.xlu0 %451, %v434
  %v453 = vpop.permute.xlu0 %452
  %454 = vset.pattern.permute.xlu0 0
  %455 = vperm.xlu0 %454, %v435
  %v456 = vpop.permute.xlu0 %455
  %457 = vset.pattern.permute.xlu0 0
  %458 = vperm.xlu0 %457, %v436
  %v459 = vpop.permute.xlu0 %458
  %460 = vset.pattern.permute.xlu0 0
  %461 = vperm.xlu0 %460, %v437
  %v462 = vpop.permute.xlu0 %461
  %463 = vset.pattern.permute.xlu0 0
  %464 = vperm.xlu0 %463, %v438
  %v465 = vpop.permute.xlu0 %464
  %466 = vset.pattern.permute.xlu0 0
  %467 = vperm.xlu0 %466, %v439
  %v468 = vpop.permute.xlu0 %467
  %469 = vset.pattern.permute.xlu0 0
  %470 = vperm.xlu0 %469, %v440
  %v471 = vpop.permute.xlu0 %470
  %472 = vset.pattern.permute.xlu0 0
  %473 = vperm.xlu0 %472, %v441
  %v474 = vpop.permute.xlu0 %473
  %475 = vset.pattern.permute.xlu0 0
  %476 = vperm.xlu0 %475, %v442
  %v477 = vpop.permute.xlu0 %476
  %478 = vset.pattern.permute.xlu0 0
  %479 = vperm.xlu0 %478, %v443
  %v480 = vpop.permute.xlu0 %479
  %481 = vset.pattern.permute.xlu0 0
  %482 = vperm.xlu0 %481, %v444
  %v483 = vpop.permute.xlu0 %482
  %484 = vset.pattern.permute.xlu0 0
  %485 = vperm.xlu0 %484, %v445
  %v486 = vpop.permute.xlu0 %485
  %487 = vset.pattern.permute.xlu0 0
  %488 = vperm.xlu0 %487, %v446
  %v489 = vpop.permute.xlu0 %488
  %490 = vset.pattern.permute.xlu0 0
  %491 = vperm.xlu0 %490, %v447
  %v492 = vpop.permute.xlu0 %491
  %493 = vset.pattern.permute.xlu0 0
  %494 = vperm.xlu0 %493, %v448
  %v495 = vpop.permute.xlu0 %494
  %496 = vset.pattern.permute.xlu0 0
  %497 = vperm.xlu0 %496, %v449
  %v498 = vpop.permute.xlu0 %497
  %v499 = vlaneseq
  %v500 = vshrl.u32 %v499, 7
  %v501 = vsub.s32 0, %v500
  %v502 = vrot.slane %v450, %v501
  %vm503 = vcmp.eq.s32.totalorder %v453, %v502
  %vm504 = vcmp.eq.s32.totalorder %v456, %v502
  %vm505 = vcmp.eq.s32.totalorder %v459, %v502
  %vm506 = vcmp.eq.s32.totalorder %v462, %v502
  %vm507 = vcmp.eq.s32.totalorder %v465, %v502
  %vm508 = vcmp.eq.s32.totalorder %v468, %v502
  %vm509 = vcmp.eq.s32.totalorder %v471, %v502
  %vm510 = vcmp.eq.s32.totalorder %v474, %v502
  %vm511 = vcmp.eq.s32.totalorder %v477, %v502
  %vm512 = vcmp.eq.s32.totalorder %v480, %v502
  %vm513 = vcmp.eq.s32.totalorder %v483, %v502
  %vm514 = vcmp.eq.s32.totalorder %v486, %v502
  %vm515 = vcmp.eq.s32.totalorder %v489, %v502
  %vm516 = vcmp.eq.s32.totalorder %v492, %v502
  %vm517 = vcmp.eq.s32.totalorder %v495, %v502
  %vm518 = vcmp.eq.s32.totalorder %v498, %v502
  %vm519 = vmand %vm503, %vm418
  %vm520 = vmand %vm504, %vm419
  %vm521 = vmand %vm505, %vm420
  %vm522 = vmand %vm506, %vm421
  %vm523 = vmand %vm507, %vm422
  %vm524 = vmand %vm508, %vm423
  %vm525 = vmand %vm509, %vm424
  %vm526 = vmand %vm510, %vm425
  %vm527 = vmand %vm511, %vm426
  %vm528 = vmand %vm512, %vm427
  %vm529 = vmand %vm513, %vm428
  %vm530 = vmand %vm514, %vm429
  %vm531 = vmand %vm515, %vm430
  %vm532 = vmand %vm516, %vm431
  %vm533 = vmand %vm517, %vm432
  %vm534 = vmand %vm518, %vm433
  %v535 = vld [vmem:[#allocation4] sm:$0xff]
  %v536 = vld [vmem:[#allocation4 + $0x8] sm:$0xff]
  %v537 = vld [vmem:[#allocation4 + $0x10] sm:$0xff]
  %v538 = vld [vmem:[#allocation4 + $0x18] sm:$0xff]
  %v539 = vld [vmem:[#allocation4 + $0x20] sm:$0xff]
  %v540 = vld [vmem:[#allocation4 + $0x28] sm:$0xff]
  %v541 = vld [vmem:[#allocation4 + $0x30] sm:$0xff]
  %v542 = vld [vmem:[#allocation4 + $0x38] sm:$0xff]
  %v543 = vld [vmem:[#allocation4 + $0x40] sm:$0xff]
  %v544 = vld [vmem:[#allocation4 + $0x48] sm:$0xff]
  %v545 = vld [vmem:[#allocation4 + $0x50] sm:$0xff]
  %v546 = vld [vmem:[#allocation4 + $0x58] sm:$0xff]
  %v547 = vld [vmem:[#allocation4 + $0x60] sm:$0xff]
  %v548 = vld [vmem:[#allocation4 + $0x68] sm:$0xff]
  %v549 = vld [vmem:[#allocation4 + $0x70] sm:$0xff]
  %v550 = vld [vmem:[#allocation4 + $0x78] sm:$0xff]
  %v551 = vsel %vm519, %v345, 0.0
  %v552 = vsel %vm520, %v346, 0.0
  %v553 = vsel %vm521, %v347, 0.0
  %v554 = vsel %vm522, %v348, 0.0
  %v555 = vsel %vm523, %v349, 0.0
  %v556 = vsel %vm524, %v350, 0.0
  %v557 = vsel %vm525, %v351, 0.0
  %v558 = vsel %vm526, %v352, 0.0
  %v559 = vsel %vm527, %v353, 0.0
  %v560 = vsel %vm528, %v354, 0.0
  %v561 = vsel %vm529, %v355, 0.0
  %v562 = vsel %vm530, %v356, 0.0
  %v563 = vsel %vm531, %v357, 0.0
  %v564 = vsel %vm532, %v358, 0.0
  %v565 = vsel %vm533, %v359, 0.0
  %v566 = vsel %vm534, %v360, 0.0
  %567 = vadd.xlane.f32.xlu0 %v551
  %v568 = vpop.xlane.xlu0 %567
  %569 = vadd.xlane.f32.xlu0 %v552
  %v570 = vpop.xlane.xlu0 %569
  %571 = vadd.xlane.f32.xlu0 %v553
  %v572 = vpop.xlane.xlu0 %571
  %573 = vadd.xlane.f32.xlu0 %v554
  %v574 = vpop.xlane.xlu0 %573
  %575 = vadd.xlane.f32.xlu0 %v555
  %v576 = vpop.xlane.xlu0 %575
  %577 = vadd.xlane.f32.xlu0 %v556
  %v578 = vpop.xlane.xlu0 %577
  %579 = vadd.xlane.f32.xlu0 %v557
  %v580 = vpop.xlane.xlu0 %579
  %581 = vadd.xlane.f32.xlu0 %v558
  %v582 = vpop.xlane.xlu0 %581
  %583 = vadd.xlane.f32.xlu0 %v559
  %v584 = vpop.xlane.xlu0 %583
  %585 = vadd.xlane.f32.xlu0 %v560
  %v586 = vpop.xlane.xlu0 %585
  %587 = vadd.xlane.f32.xlu0 %v561
  %v588 = vpop.xlane.xlu0 %587
  %589 = vadd.xlane.f32.xlu0 %v562
  %v590 = vpop.xlane.xlu0 %589
  %591 = vadd.xlane.f32.xlu0 %v563
  %v592 = vpop.xlane.xlu0 %591
  %593 = vadd.xlane.f32.xlu0 %v564
  %v594 = vpop.xlane.xlu0 %593
  %595 = vadd.xlane.f32.xlu0 %v565
  %v596 = vpop.xlane.xlu0 %595
  %597 = vadd.xlane.f32.xlu0 %v566
  %v598 = vpop.xlane.xlu0 %597
  %v599 = vadd.f32 %v535, %v568
  %v600 = vadd.f32 %v536, %v570
  %v601 = vadd.f32 %v537, %v572
  %v602 = vadd.f32 %v538, %v574
  %v603 = vadd.f32 %v539, %v576
  %v604 = vadd.f32 %v540, %v578
  %v605 = vadd.f32 %v541, %v580
  %v606 = vadd.f32 %v542, %v582
  %v607 = vadd.f32 %v543, %v584
  %v608 = vadd.f32 %v544, %v586
  %v609 = vadd.f32 %v545, %v588
  %v610 = vadd.f32 %v546, %v590
  %v611 = vadd.f32 %v547, %v592
  %v612 = vadd.f32 %v548, %v594
  %v613 = vadd.f32 %v549, %v596
  %v614 = vadd.f32 %v550, %v598
  %vm615 = vcmask 7168
  %616 = vst.msk [vmem:[#allocation4] sm:$0xff] %vm615, %v599
  %617 = vst.msk [vmem:[#allocation4 + $0x8] sm:$0xff] %vm615, %v600
  %618 = vst.msk [vmem:[#allocation4 + $0x10] sm:$0xff] %vm615, %v601
  %619 = vst.msk [vmem:[#allocation4 + $0x18] sm:$0xff] %vm615, %v602
  %620 = vst.msk [vmem:[#allocation4 + $0x20] sm:$0xff] %vm615, %v603
  %621 = vst.msk [vmem:[#allocation4 + $0x28] sm:$0xff] %vm615, %v604
  %622 = vst.msk [vmem:[#allocation4 + $0x30] sm:$0xff] %vm615, %v605
  %623 = vst.msk [vmem:[#allocation4 + $0x38] sm:$0xff] %vm615, %v606
  %624 = vst.msk [vmem:[#allocation4 + $0x40] sm:$0xff] %vm615, %v607
  %625 = vst.msk [vmem:[#allocation4 + $0x48] sm:$0xff] %vm615, %v608
  %626 = vst.msk [vmem:[#allocation4 + $0x50] sm:$0xff] %vm615, %v609
  %627 = vst.msk [vmem:[#allocation4 + $0x58] sm:$0xff] %vm615, %v610
  %628 = vst.msk [vmem:[#allocation4 + $0x60] sm:$0xff] %vm615, %v611
  %629 = vst.msk [vmem:[#allocation4 + $0x68] sm:$0xff] %vm615, %v612
  %630 = vst.msk [vmem:[#allocation4 + $0x70] sm:$0xff] %vm615, %v613
  %631 = vst.msk [vmem:[#allocation4 + $0x78] sm:$0xff] %vm615, %v614
  %v632 = vld [vmem:[#allocation5] sm:$0xff]
  %v633 = vld [vmem:[#allocation5 + $0x8] sm:$0xff]
  %v634 = vld [vmem:[#allocation5 + $0x10] sm:$0xff]
  %v635 = vld [vmem:[#allocation5 + $0x18] sm:$0xff]
  %v636 = vld [vmem:[#allocation5 + $0x20] sm:$0xff]
  %v637 = vld [vmem:[#allocation5 + $0x28] sm:$0xff]
  %v638 = vld [vmem:[#allocation5 + $0x30] sm:$0xff]
  %v639 = vld [vmem:[#allocation5 + $0x38] sm:$0xff]
  %v640 = vld [vmem:[#allocation5 + $0x40] sm:$0xff]
  %v641 = vld [vmem:[#allocation5 + $0x48] sm:$0xff]
  %v642 = vld [vmem:[#allocation5 + $0x50] sm:$0xff]
  %v643 = vld [vmem:[#allocation5 + $0x58] sm:$0xff]
  %v644 = vld [vmem:[#allocation5 + $0x60] sm:$0xff]
  %v645 = vld [vmem:[#allocation5 + $0x68] sm:$0xff]
  %v646 = vld [vmem:[#allocation5 + $0x70] sm:$0xff]
  %v647 = vld [vmem:[#allocation5 + $0x78] sm:$0xff]
  %v648 = vsel %vm519, 1, 0
  %v649 = vsel %vm520, 1, 0
  %v650 = vsel %vm521, 1, 0
  %v651 = vsel %vm522, 1, 0
  %v652 = vsel %vm523, 1, 0
  %v653 = vsel %vm524, 1, 0
  %v654 = vsel %vm525, 1, 0
  %v655 = vsel %vm526, 1, 0
  %v656 = vsel %vm527, 1, 0
  %v657 = vsel %vm528, 1, 0
  %v658 = vsel %vm529, 1, 0
  %v659 = vsel %vm530, 1, 0
  %v660 = vsel %vm531, 1, 0
  %v661 = vsel %vm532, 1, 0
  %v662 = vsel %vm533, 1, 0
  %v663 = vsel %vm534, 1, 0
  %v664 = vcvt.s32.f32 %v648
  %v665 = vcvt.s32.f32 %v649
  %v666 = vcvt.s32.f32 %v650
  %v667 = vcvt.s32.f32 %v651
  %v668 = vcvt.s32.f32 %v652
  %v669 = vcvt.s32.f32 %v653
  %v670 = vcvt.s32.f32 %v654
  %v671 = vcvt.s32.f32 %v655
  %v672 = vcvt.s32.f32 %v656
  %v673 = vcvt.s32.f32 %v657
  %v674 = vcvt.s32.f32 %v658
  %v675 = vcvt.s32.f32 %v659
  %v676 = vcvt.s32.f32 %v660
  %v677 = vcvt.s32.f32 %v661
  %v678 = vcvt.s32.f32 %v662
  %v679 = vcvt.s32.f32 %v663
  %680 = vadd.xlane.f32.xlu0 %v664
  %v681 = vpop.xlane.xlu0 %680
  %682 = vadd.xlane.f32.xlu0 %v665
  %v683 = vpop.xlane.xlu0 %682
  %684 = vadd.xlane.f32.xlu0 %v666
  %v685 = vpop.xlane.xlu0 %684
  %686 = vadd.xlane.f32.xlu0 %v667
  %v687 = vpop.xlane.xlu0 %686
  %688 = vadd.xlane.f32.xlu0 %v668
  %v689 = vpop.xlane.xlu0 %688
  %690 = vadd.xlane.f32.xlu0 %v669
  %v691 = vpop.xlane.xlu0 %690
  %692 = vadd.xlane.f32.xlu0 %v670
  %v693 = vpop.xlane.xlu0 %692
  %694 = vadd.xlane.f32.xlu0 %v671
  %v695 = vpop.xlane.xlu0 %694
  %696 = vadd.xlane.f32.xlu0 %v672
  %v697 = vpop.xlane.xlu0 %696
  %698 = vadd.xlane.f32.xlu0 %v673
  %v699 = vpop.xlane.xlu0 %698
  %700 = vadd.xlane.f32.xlu0 %v674
  %v701 = vpop.xlane.xlu0 %700
  %702 = vadd.xlane.f32.xlu0 %v675
  %v703 = vpop.xlane.xlu0 %702
  %704 = vadd.xlane.f32.xlu0 %v676
  %v705 = vpop.xlane.xlu0 %704
  %706 = vadd.xlane.f32.xlu0 %v677
  %v707 = vpop.xlane.xlu0 %706
  %708 = vadd.xlane.f32.xlu0 %v678
  %v709 = vpop.xlane.xlu0 %708
  %710 = vadd.xlane.f32.xlu0 %v679
  %v711 = vpop.xlane.xlu0 %710
  %v712 = vadd.f32 %v632, %v681
  %v713 = vadd.f32 %v633, %v683
  %v714 = vadd.f32 %v634, %v685
  %v715 = vadd.f32 %v635, %v687
  %v716 = vadd.f32 %v636, %v689
  %v717 = vadd.f32 %v637, %v691
  %v718 = vadd.f32 %v638, %v693
  %v719 = vadd.f32 %v639, %v695
  %v720 = vadd.f32 %v640, %v697
  %v721 = vadd.f32 %v641, %v699
  %v722 = vadd.f32 %v642, %v701
  %v723 = vadd.f32 %v643, %v703
  %v724 = vadd.f32 %v644, %v705
  %v725 = vadd.f32 %v645, %v707
  %v726 = vadd.f32 %v646, %v709
  %v727 = vadd.f32 %v647, %v711
  %728 = vst.msk [vmem:[#allocation5] sm:$0xff] %vm615, %v712
  %729 = vst.msk [vmem:[#allocation5 + $0x8] sm:$0xff] %vm615, %v713
  %730 = vst.msk [vmem:[#allocation5 + $0x10] sm:$0xff] %vm615, %v714
  %731 = vst.msk [vmem:[#allocation5 + $0x18] sm:$0xff] %vm615, %v715
  %732 = vst.msk [vmem:[#allocation5 + $0x20] sm:$0xff] %vm615, %v716
  %733 = vst.msk [vmem:[#allocation5 + $0x28] sm:$0xff] %vm615, %v717
  %734 = vst.msk [vmem:[#allocation5 + $0x30] sm:$0xff] %vm615, %v718
  %735 = vst.msk [vmem:[#allocation5 + $0x38] sm:$0xff] %vm615, %v719
  %736 = vst.msk [vmem:[#allocation5 + $0x40] sm:$0xff] %vm615, %v720
  %737 = vst.msk [vmem:[#allocation5 + $0x48] sm:$0xff] %vm615, %v721
  %738 = vst.msk [vmem:[#allocation5 + $0x50] sm:$0xff] %vm615, %v722
  %739 = vst.msk [vmem:[#allocation5 + $0x58] sm:$0xff] %vm615, %v723
  %740 = vst.msk [vmem:[#allocation5 + $0x60] sm:$0xff] %vm615, %v724
  %741 = vst.msk [vmem:[#allocation5 + $0x68] sm:$0xff] %vm615, %v725
  %742 = vst.msk [vmem:[#allocation5 + $0x70] sm:$0xff] %vm615, %v726
  %743 = vst.msk [vmem:[#allocation5 + $0x78] sm:$0xff] %vm615, %v727
  %v744 = vsel %vm418, %v345, -1e+30
  %v745 = vsel %vm419, %v346, -1e+30
  %v746 = vsel %vm420, %v347, -1e+30
  %v747 = vsel %vm421, %v348, -1e+30
  %v748 = vsel %vm422, %v349, -1e+30
  %v749 = vsel %vm423, %v350, -1e+30
  %v750 = vsel %vm424, %v351, -1e+30
  %v751 = vsel %vm425, %v352, -1e+30
  %v752 = vsel %vm426, %v353, -1e+30
  %v753 = vsel %vm427, %v354, -1e+30
  %v754 = vsel %vm428, %v355, -1e+30
  %v755 = vsel %vm429, %v356, -1e+30
  %v756 = vsel %vm430, %v357, -1e+30
  %v757 = vsel %vm431, %v358, -1e+30
  %v758 = vsel %vm432, %v359, -1e+30
  %v759 = vsel %vm433, %v360, -1e+30
  %v760 = vld [vmem:[#allocation2] sm:$0xff]
  %v761 = vld [vmem:[#allocation2 + $0x8] sm:$0xff]
  %v762 = vld [vmem:[#allocation2 + $0x10] sm:$0xff]
  %v763 = vld [vmem:[#allocation2 + $0x18] sm:$0xff]
  %v764 = vld [vmem:[#allocation2 + $0x20] sm:$0xff]
  %v765 = vld [vmem:[#allocation2 + $0x28] sm:$0xff]
  %v766 = vld [vmem:[#allocation2 + $0x30] sm:$0xff]
  %v767 = vld [vmem:[#allocation2 + $0x38] sm:$0xff]
  %v768 = vld [vmem:[#allocation2 + $0x40] sm:$0xff]
  %v769 = vld [vmem:[#allocation2 + $0x48] sm:$0xff]
  %v770 = vld [vmem:[#allocation2 + $0x50] sm:$0xff]
  %v771 = vld [vmem:[#allocation2 + $0x58] sm:$0xff]
  %v772 = vld [vmem:[#allocation2 + $0x60] sm:$0xff]
  %v773 = vld [vmem:[#allocation2 + $0x68] sm:$0xff]
  %v774 = vld [vmem:[#allocation2 + $0x70] sm:$0xff]
  %v775 = vld [vmem:[#allocation2 + $0x78] sm:$0xff]
  %776 = vmax.xlane.f32.xlu0 %v744
  %v777 = vpop.xlane.xlu0 %776
  %778 = vmax.xlane.f32.xlu0 %v745
  %v779 = vpop.xlane.xlu0 %778
  %780 = vmax.xlane.f32.xlu0 %v746
  %v781 = vpop.xlane.xlu0 %780
  %782 = vmax.xlane.f32.xlu0 %v747
  %v783 = vpop.xlane.xlu0 %782
  %784 = vmax.xlane.f32.xlu0 %v748
  %v785 = vpop.xlane.xlu0 %784
  %786 = vmax.xlane.f32.xlu0 %v749
  %v787 = vpop.xlane.xlu0 %786
  %788 = vmax.xlane.f32.xlu0 %v750
  %v789 = vpop.xlane.xlu0 %788
  %790 = vmax.xlane.f32.xlu0 %v751
  %v791 = vpop.xlane.xlu0 %790
  %792 = vmax.xlane.f32.xlu0 %v752
  %v793 = vpop.xlane.xlu0 %792
  %794 = vmax.xlane.f32.xlu0 %v753
  %v795 = vpop.xlane.xlu0 %794
  %796 = vmax.xlane.f32.xlu0 %v754
  %v797 = vpop.xlane.xlu0 %796
  %798 = vmax.xlane.f32.xlu0 %v755
  %v799 = vpop.xlane.xlu0 %798
  %800 = vmax.xlane.f32.xlu0 %v756
  %v801 = vpop.xlane.xlu0 %800
  %802 = vmax.xlane.f32.xlu0 %v757
  %v803 = vpop.xlane.xlu0 %802
  %804 = vmax.xlane.f32.xlu0 %v758
  %v805 = vpop.xlane.xlu0 %804
  %806 = vmax.xlane.f32.xlu0 %v759
  %v807 = vpop.xlane.xlu0 %806
  %v808 = vmax.f32 %v760, %v777
  %v809 = vmax.f32 %v761, %v779
  %v810 = vmax.f32 %v762, %v781
  %v811 = vmax.f32 %v763, %v783
  %v812 = vmax.f32 %v764, %v785
  %v813 = vmax.f32 %v765, %v787
  %v814 = vmax.f32 %v766, %v789
  %v815 = vmax.f32 %v767, %v791
  %v816 = vmax.f32 %v768, %v793
  %v817 = vmax.f32 %v769, %v795
  %v818 = vmax.f32 %v770, %v797
  %v819 = vmax.f32 %v771, %v799
  %v820 = vmax.f32 %v772, %v801
  %v821 = vmax.f32 %v773, %v803
  %v822 = vmax.f32 %v774, %v805
  %v823 = vmax.f32 %v775, %v807
  %v824 = vld [vmem:[#allocation3] sm:$0xff]
  %v825 = vld [vmem:[#allocation3 + $0x8] sm:$0xff]
  %v826 = vld [vmem:[#allocation3 + $0x10] sm:$0xff]
  %v827 = vld [vmem:[#allocation3 + $0x18] sm:$0xff]
  %v828 = vld [vmem:[#allocation3 + $0x20] sm:$0xff]
  %v829 = vld [vmem:[#allocation3 + $0x28] sm:$0xff]
  %v830 = vld [vmem:[#allocation3 + $0x30] sm:$0xff]
  %v831 = vld [vmem:[#allocation3 + $0x38] sm:$0xff]
  %v832 = vld [vmem:[#allocation3 + $0x40] sm:$0xff]
  %v833 = vld [vmem:[#allocation3 + $0x48] sm:$0xff]
  %v834 = vld [vmem:[#allocation3 + $0x50] sm:$0xff]
  %v835 = vld [vmem:[#allocation3 + $0x58] sm:$0xff]
  %v836 = vld [vmem:[#allocation3 + $0x60] sm:$0xff]
  %v837 = vld [vmem:[#allocation3 + $0x68] sm:$0xff]
  %v838 = vld [vmem:[#allocation3 + $0x70] sm:$0xff]
  %v839 = vld [vmem:[#allocation3 + $0x78] sm:$0xff]
  %v840 = vsub.f32 %v760, %v808
  %v841 = vsub.f32 %v761, %v809
  %v842 = vsub.f32 %v762, %v810
  %v843 = vsub.f32 %v763, %v811
  %v844 = vsub.f32 %v764, %v812
  %v845 = vsub.f32 %v765, %v813
  %v846 = vsub.f32 %v766, %v814
  %v847 = vsub.f32 %v767, %v815
  %v848 = vsub.f32 %v768, %v816
  %v849 = vsub.f32 %v769, %v817
  %v850 = vsub.f32 %v770, %v818
  %v851 = vsub.f32 %v771, %v819
  %v852 = vsub.f32 %v772, %v820
  %v853 = vsub.f32 %v773, %v821
  %v854 = vsub.f32 %v774, %v822
  %v855 = vsub.f32 %v775, %v823
  %v856 = vmul.f32 %v840, 1.442695
  %v857 = vpow.pop %v856
  %v858 = vmul.f32 %v841, 1.442695
  %v859 = vpow.pop %v858
  %v860 = vmul.f32 %v842, 1.442695
  %v861 = vpow.pop %v860
  %v862 = vmul.f32 %v843, 1.442695
  %v863 = vpow.pop %v862
  %v864 = vmul.f32 %v844, 1.442695
  %v865 = vpow.pop %v864
  %v866 = vmul.f32 %v845, 1.442695
  %v867 = vpow.pop %v866
  %v868 = vmul.f32 %v846, 1.442695
  %v869 = vpow.pop %v868
  %v870 = vmul.f32 %v847, 1.442695
  %v871 = vpow.pop %v870
  %v872 = vmul.f32 %v848, 1.442695
  %v873 = vpow.pop %v872
  %v874 = vmul.f32 %v849, 1.442695
  %v875 = vpow.pop %v874
  %v876 = vmul.f32 %v850, 1.442695
  %v877 = vpow.pop %v876
  %v878 = vmul.f32 %v851, 1.442695
  %v879 = vpow.pop %v878
  %v880 = vmul.f32 %v852, 1.442695
  %v881 = vpow.pop %v880
  %v882 = vmul.f32 %v853, 1.442695
  %v883 = vpow.pop %v882
  %v884 = vmul.f32 %v854, 1.442695
  %v885 = vpow.pop %v884
  %v886 = vmul.f32 %v855, 1.442695
  %v887 = vpow.pop %v886
  %v888 = vmul.f32 %v824, %v857
  %v889 = vmul.f32 %v825, %v859
  %v890 = vmul.f32 %v826, %v861
  %v891 = vmul.f32 %v827, %v863
  %v892 = vmul.f32 %v828, %v865
  %v893 = vmul.f32 %v829, %v867
  %v894 = vmul.f32 %v830, %v869
  %v895 = vmul.f32 %v831, %v871
  %v896 = vmul.f32 %v832, %v873
  %v897 = vmul.f32 %v833, %v875
  %v898 = vmul.f32 %v834, %v877
  %v899 = vmul.f32 %v835, %v879
  %v900 = vmul.f32 %v836, %v881
  %v901 = vmul.f32 %v837, %v883
  %v902 = vmul.f32 %v838, %v885
  %v903 = vmul.f32 %v839, %v887
  %905 = vset.pattern.permute.xlu0 0
  %906 = vperm.xlu0 %905, %v808
  %v907 = vpop.permute.xlu0 %906
  %910 = vset.pattern.permute.xlu0 0
  %911 = vperm.xlu0 %910, %v809
  %v912 = vpop.permute.xlu0 %911
  %915 = vset.pattern.permute.xlu0 0
  %916 = vperm.xlu0 %915, %v810
  %v917 = vpop.permute.xlu0 %916
  %920 = vset.pattern.permute.xlu0 0
  %921 = vperm.xlu0 %920, %v811
  %v922 = vpop.permute.xlu0 %921
  %925 = vset.pattern.permute.xlu0 0
  %926 = vperm.xlu0 %925, %v812
  %v927 = vpop.permute.xlu0 %926
  %930 = vset.pattern.permute.xlu0 0
  %931 = vperm.xlu0 %930, %v813
  %v932 = vpop.permute.xlu0 %931
  %935 = vset.pattern.permute.xlu0 0
  %936 = vperm.xlu0 %935, %v814
  %v937 = vpop.permute.xlu0 %936
  %940 = vset.pattern.permute.xlu0 0
  %941 = vperm.xlu0 %940, %v815
  %v942 = vpop.permute.xlu0 %941
  %945 = vset.pattern.permute.xlu0 0
  %946 = vperm.xlu0 %945, %v816
  %v947 = vpop.permute.xlu0 %946
  %950 = vset.pattern.permute.xlu0 0
  %951 = vperm.xlu0 %950, %v817
  %v952 = vpop.permute.xlu0 %951
  %955 = vset.pattern.permute.xlu0 0
  %956 = vperm.xlu0 %955, %v818
  %v957 = vpop.permute.xlu0 %956
  %960 = vset.pattern.permute.xlu0 0
  %961 = vperm.xlu0 %960, %v819
  %v962 = vpop.permute.xlu0 %961
  %965 = vset.pattern.permute.xlu0 0
  %966 = vperm.xlu0 %965, %v820
  %v967 = vpop.permute.xlu0 %966
  %970 = vset.pattern.permute.xlu0 0
  %971 = vperm.xlu0 %970, %v821
  %v972 = vpop.permute.xlu0 %971
  %975 = vset.pattern.permute.xlu0 0
  %976 = vperm.xlu0 %975, %v822
  %v977 = vpop.permute.xlu0 %976
  %980 = vset.pattern.permute.xlu0 0
  %981 = vperm.xlu0 %980, %v823
  %v982 = vpop.permute.xlu0 %981
  %v984 = vsub.f32 %v744, %v907
  %v985 = vsub.f32 %v745, %v912
  %v986 = vsub.f32 %v746, %v917
  %v987 = vsub.f32 %v747, %v922
  %v988 = vsub.f32 %v748, %v927
  %v989 = vsub.f32 %v749, %v932
  %v990 = vsub.f32 %v750, %v937
  %v991 = vsub.f32 %v751, %v942
  %v992 = vsub.f32 %v752, %v947
  %v993 = vsub.f32 %v753, %v952
  %v994 = vsub.f32 %v754, %v957
  %v995 = vsub.f32 %v755, %v962
  %v996 = vsub.f32 %v756, %v967
  %v997 = vsub.f32 %v757, %v972
  %v998 = vsub.f32 %v758, %v977
  %v999 = vsub.f32 %v759, %v982
  %v1000 = vmul.f32 %v984, 1.442695
  %v1001 = vpow.pop %v1000
  %v1002 = vmul.f32 %v985, 1.442695
  %v1003 = vpow.pop %v1002
  %v1004 = vmul.f32 %v986, 1.442695
  %v1005 = vpow.pop %v1004
  %v1006 = vmul.f32 %v987, 1.442695
  %v1007 = vpow.pop %v1006
  %v1008 = vmul.f32 %v988, 1.442695
  %v1009 = vpow.pop %v1008
  %v1010 = vmul.f32 %v989, 1.442695
  %v1011 = vpow.pop %v1010
  %v1012 = vmul.f32 %v990, 1.442695
  %v1013 = vpow.pop %v1012
  %v1014 = vmul.f32 %v991, 1.442695
  %v1015 = vpow.pop %v1014
  %v1016 = vmul.f32 %v992, 1.442695
  %v1017 = vpow.pop %v1016
  %v1018 = vmul.f32 %v993, 1.442695
  %v1019 = vpow.pop %v1018
  %v1020 = vmul.f32 %v994, 1.442695
  %v1021 = vpow.pop %v1020
  %v1022 = vmul.f32 %v995, 1.442695
  %v1023 = vpow.pop %v1022
  %v1024 = vmul.f32 %v996, 1.442695
  %v1025 = vpow.pop %v1024
  %v1026 = vmul.f32 %v997, 1.442695
  %v1027 = vpow.pop %v1026
  %v1028 = vmul.f32 %v998, 1.442695
  %v1029 = vpow.pop %v1028
  %v1030 = vmul.f32 %v999, 1.442695
  %v1031 = vpow.pop %v1030
  %1032 = vadd.xlane.f32.xlu0 %v1001
  %v1033 = vpop.xlane.xlu0 %1032
  %1034 = vadd.xlane.f32.xlu0 %v1003
  %v1035 = vpop.xlane.xlu0 %1034
  %1036 = vadd.xlane.f32.xlu0 %v1005
  %v1037 = vpop.xlane.xlu0 %1036
  %1038 = vadd.xlane.f32.xlu0 %v1007
  %v1039 = vpop.xlane.xlu0 %1038
  %1040 = vadd.xlane.f32.xlu0 %v1009
  %v1041 = vpop.xlane.xlu0 %1040
  %1042 = vadd.xlane.f32.xlu0 %v1011
  %v1043 = vpop.xlane.xlu0 %1042
  %1044 = vadd.xlane.f32.xlu0 %v1013
  %v1045 = vpop.xlane.xlu0 %1044
  %1046 = vadd.xlane.f32.xlu0 %v1015
  %v1047 = vpop.xlane.xlu0 %1046
  %1048 = vadd.xlane.f32.xlu0 %v1017
  %v1049 = vpop.xlane.xlu0 %1048
  %1050 = vadd.xlane.f32.xlu0 %v1019
  %v1051 = vpop.xlane.xlu0 %1050
  %1052 = vadd.xlane.f32.xlu0 %v1021
  %v1053 = vpop.xlane.xlu0 %1052
  %1054 = vadd.xlane.f32.xlu0 %v1023
  %v1055 = vpop.xlane.xlu0 %1054
  %1056 = vadd.xlane.f32.xlu0 %v1025
  %v1057 = vpop.xlane.xlu0 %1056
  %1058 = vadd.xlane.f32.xlu0 %v1027
  %v1059 = vpop.xlane.xlu0 %1058
  %1060 = vadd.xlane.f32.xlu0 %v1029
  %v1061 = vpop.xlane.xlu0 %1060
  %1062 = vadd.xlane.f32.xlu0 %v1031
  %v1063 = vpop.xlane.xlu0 %1062
  %v1064 = vadd.f32 %v888, %v1033
  %v1065 = vadd.f32 %v889, %v1035
  %v1066 = vadd.f32 %v890, %v1037
  %v1067 = vadd.f32 %v891, %v1039
  %v1068 = vadd.f32 %v892, %v1041
  %v1069 = vadd.f32 %v893, %v1043
  %v1070 = vadd.f32 %v894, %v1045
  %v1071 = vadd.f32 %v895, %v1047
  %v1072 = vadd.f32 %v896, %v1049
  %v1073 = vadd.f32 %v897, %v1051
  %v1074 = vadd.f32 %v898, %v1053
  %v1075 = vadd.f32 %v899, %v1055
  %v1076 = vadd.f32 %v900, %v1057
  %v1077 = vadd.f32 %v901, %v1059
  %v1078 = vadd.f32 %v902, %v1061
  %v1079 = vadd.f32 %v903, %v1063
  %1080 = vst.msk [vmem:[#allocation3] sm:$0xff] %vm615, %v1064
  %1081 = vst.msk [vmem:[#allocation3 + $0x8] sm:$0xff] %vm615, %v1065
  %1082 = vst.msk [vmem:[#allocation3 + $0x10] sm:$0xff] %vm615, %v1066
  %1083 = vst.msk [vmem:[#allocation3 + $0x18] sm:$0xff] %vm615, %v1067
  %1084 = vst.msk [vmem:[#allocation3 + $0x20] sm:$0xff] %vm615, %v1068
  %1085 = vst.msk [vmem:[#allocation3 + $0x28] sm:$0xff] %vm615, %v1069
  %1086 = vst.msk [vmem:[#allocation3 + $0x30] sm:$0xff] %vm615, %v1070
  %1087 = vst.msk [vmem:[#allocation3 + $0x38] sm:$0xff] %vm615, %v1071
  %1088 = vst.msk [vmem:[#allocation3 + $0x40] sm:$0xff] %vm615, %v1072
  %1089 = vst.msk [vmem:[#allocation3 + $0x48] sm:$0xff] %vm615, %v1073
  %1090 = vst.msk [vmem:[#allocation3 + $0x50] sm:$0xff] %vm615, %v1074
  %1091 = vst.msk [vmem:[#allocation3 + $0x58] sm:$0xff] %vm615, %v1075
  %1092 = vst.msk [vmem:[#allocation3 + $0x60] sm:$0xff] %vm615, %v1076
  %1093 = vst.msk [vmem:[#allocation3 + $0x68] sm:$0xff] %vm615, %v1077
  %1094 = vst.msk [vmem:[#allocation3 + $0x70] sm:$0xff] %vm615, %v1078
  %1095 = vst.msk [vmem:[#allocation3 + $0x78] sm:$0xff] %vm615, %v1079
  %1096 = vst.msk [vmem:[#allocation2] sm:$0xff] %vm615, %v808
  %1097 = vst.msk [vmem:[#allocation2 + $0x8] sm:$0xff] %vm615, %v809
  %1098 = vst.msk [vmem:[#allocation2 + $0x10] sm:$0xff] %vm615, %v810
  %1099 = vst.msk [vmem:[#allocation2 + $0x18] sm:$0xff] %vm615, %v811
  %1100 = vst.msk [vmem:[#allocation2 + $0x20] sm:$0xff] %vm615, %v812
  %1101 = vst.msk [vmem:[#allocation2 + $0x28] sm:$0xff] %vm615, %v813
  %1102 = vst.msk [vmem:[#allocation2 + $0x30] sm:$0xff] %vm615, %v814
  %1103 = vst.msk [vmem:[#allocation2 + $0x38] sm:$0xff] %vm615, %v815
  %1104 = vst.msk [vmem:[#allocation2 + $0x40] sm:$0xff] %vm615, %v816
  %1105 = vst.msk [vmem:[#allocation2 + $0x48] sm:$0xff] %vm615, %v817
  %1106 = vst.msk [vmem:[#allocation2 + $0x50] sm:$0xff] %vm615, %v818
  %1107 = vst.msk [vmem:[#allocation2 + $0x58] sm:$0xff] %vm615, %v819
  %1108 = vst.msk [vmem:[#allocation2 + $0x60] sm:$0xff] %vm615, %v820
  %1109 = vst.msk [vmem:[#allocation2 + $0x68] sm:$0xff] %vm615, %v821
  %1110 = vst.msk [vmem:[#allocation2 + $0x70] sm:$0xff] %vm615, %v822
  %1111 = vst.msk [vmem:[#allocation2 + $0x78] sm:$0xff] %vm615, %v823
  // Predicated region
  $region22: #{tpu_custom_call.1} parent=0 // pred_check
    %p1112 = pneg %p18
  $region23: #{tpu_custom_call.1} parent=0 // pred_check_branch
    %1114 = sbr.rel (%p1112) target = $region25
  $region24: #{tpu_custom_call.1} parent=0 // pred_region
    %v1115 = vld [vmem:[#allocation2] sm:$0xff]
    %v1116 = vld [vmem:[#allocation2 + $0x8] sm:$0xff]
    %v1117 = vld [vmem:[#allocation2 + $0x10] sm:$0xff]
    %v1118 = vld [vmem:[#allocation2 + $0x18] sm:$0xff]
    %v1119 = vld [vmem:[#allocation2 + $0x20] sm:$0xff]
    %v1120 = vld [vmem:[#allocation2 + $0x28] sm:$0xff]
    %v1121 = vld [vmem:[#allocation2 + $0x30] sm:$0xff]
    %v1122 = vld [vmem:[#allocation2 + $0x38] sm:$0xff]
    %v1123 = vld [vmem:[#allocation2 + $0x40] sm:$0xff]
    %v1124 = vld [vmem:[#allocation2 + $0x48] sm:$0xff]
    %v1125 = vld [vmem:[#allocation2 + $0x50] sm:$0xff]
    %v1126 = vld [vmem:[#allocation2 + $0x58] sm:$0xff]
    %v1127 = vld [vmem:[#allocation2 + $0x60] sm:$0xff]
    %v1128 = vld [vmem:[#allocation2 + $0x68] sm:$0xff]
    %v1129 = vld [vmem:[#allocation2 + $0x70] sm:$0xff]
    %v1130 = vld [vmem:[#allocation2 + $0x78] sm:$0xff]
    %v1131 = vld [vmem:[#allocation3] sm:$0xff]
    %v1132 = vld [vmem:[#allocation3 + $0x8] sm:$0xff]
    %v1133 = vld [vmem:[#allocation3 + $0x10] sm:$0xff]
    %v1134 = vld [vmem:[#allocation3 + $0x18] sm:$0xff]
    %v1135 = vld [vmem:[#allocation3 + $0x20] sm:$0xff]
    %v1136 = vld [vmem:[#allocation3 + $0x28] sm:$0xff]
    %v1137 = vld [vmem:[#allocation3 + $0x30] sm:$0xff]
    %v1138 = vld [vmem:[#allocation3 + $0x38] sm:$0xff]
    %v1139 = vld [vmem:[#allocation3 + $0x40] sm:$0xff]
    %v1140 = vld [vmem:[#allocation3 + $0x48] sm:$0xff]
    %v1141 = vld [vmem:[#allocation3 + $0x50] sm:$0xff]
    %v1142 = vld [vmem:[#allocation3 + $0x58] sm:$0xff]
    %v1143 = vld [vmem:[#allocation3 + $0x60] sm:$0xff]
    %v1144 = vld [vmem:[#allocation3 + $0x68] sm:$0xff]
    %v1145 = vld [vmem:[#allocation3 + $0x70] sm:$0xff]
    %v1146 = vld [vmem:[#allocation3 + $0x78] sm:$0xff]
    %v1147 = vlog2.pop %v1131
    %v1148 = vmul.f32 %v1147, 0.6931472
    %v1149 = vlog2.pop %v1132
    %v1150 = vmul.f32 %v1149, 0.6931472
    %v1151 = vlog2.pop %v1133
    %v1152 = vmul.f32 %v1151, 0.6931472
    %v1153 = vlog2.pop %v1134
    %v1154 = vmul.f32 %v1153, 0.6931472
    %v1155 = vlog2.pop %v1135
    %v1156 = vmul.f32 %v1155, 0.6931472
    %v1157 = vlog2.pop %v1136
    %v1158 = vmul.f32 %v1157, 0.6931472
    %v1159 = vlog2.pop %v1137
    %v1160 = vmul.f32 %v1159, 0.6931472
    %v1161 = vlog2.pop %v1138
    %v1162 = vmul.f32 %v1161, 0.6931472
    %v1163 = vlog2.pop %v1139
    %v1164 = vmul.f32 %v1163, 0.6931472
    %v1165 = vlog2.pop %v1140
    %v1166 = vmul.f32 %v1165, 0.6931472
    %v1167 = vlog2.pop %v1141
    %v1168 = vmul.f32 %v1167, 0.6931472
    %v1169 = vlog2.pop %v1142
    %v1170 = vmul.f32 %v1169, 0.6931472
    %v1171 = vlog2.pop %v1143
    %v1172 = vmul.f32 %v1171, 0.6931472
    %v1173 = vlog2.pop %v1144
    %v1174 = vmul.f32 %v1173, 0.6931472
    %v1175 = vlog2.pop %v1145
    %v1176 = vmul.f32 %v1175, 0.6931472
    %v1177 = vlog2.pop %v1146
    %v1178 = vmul.f32 %v1177, 0.6931472
    %v1179 = vadd.f32 %v1115, %v1148
    %v1180 = vadd.f32 %v1116, %v1150
    %v1181 = vadd.f32 %v1117, %v1152
    %v1182 = vadd.f32 %v1118, %v1154
    %v1183 = vadd.f32 %v1119, %v1156
    %v1184 = vadd.f32 %v1120, %v1158
    %v1185 = vadd.f32 %v1121, %v1160
    %v1186 = vadd.f32 %v1122, %v1162
    %v1187 = vadd.f32 %v1123, %v1164
    %v1188 = vadd.f32 %v1124, %v1166
    %v1189 = vadd.f32 %v1125, %v1168
    %v1190 = vadd.f32 %v1126, %v1170
    %v1191 = vadd.f32 %v1127, %v1172
    %v1192 = vadd.f32 %v1128, %v1174
    %v1193 = vadd.f32 %v1129, %v1176
    %v1194 = vadd.f32 %v1130, %v1178
    %v1195 = vld [vmem:[#allocation5] sm:$0xff]
    %v1196 = vld [vmem:[#allocation5 + $0x8] sm:$0xff]
    %v1197 = vld [vmem:[#allocation5 + $0x10] sm:$0xff]
    %v1198 = vld [vmem:[#allocation5 + $0x18] sm:$0xff]
    %v1199 = vld [vmem:[#allocation5 + $0x20] sm:$0xff]
    %v1200 = vld [vmem:[#allocation5 + $0x28] sm:$0xff]
    %v1201 = vld [vmem:[#allocation5 + $0x30] sm:$0xff]
    %v1202 = vld [vmem:[#allocation5 + $0x38] sm:$0xff]
    %v1203 = vld [vmem:[#allocation5 + $0x40] sm:$0xff]
    %v1204 = vld [vmem:[#allocation5 + $0x48] sm:$0xff]
    %v1205 = vld [vmem:[#allocation5 + $0x50] sm:$0xff]
    %v1206 = vld [vmem:[#allocation5 + $0x58] sm:$0xff]
    %v1207 = vld [vmem:[#allocation5 + $0x60] sm:$0xff]
    %v1208 = vld [vmem:[#allocation5 + $0x68] sm:$0xff]
    %v1209 = vld [vmem:[#allocation5 + $0x70] sm:$0xff]
    %v1210 = vld [vmem:[#allocation5 + $0x78] sm:$0xff]
    %v1211 = vld [vmem:[#allocation4] sm:$0xff]
    %v1212 = vld [vmem:[#allocation4 + $0x8] sm:$0xff]
    %v1213 = vld [vmem:[#allocation4 + $0x10] sm:$0xff]
    %v1214 = vld [vmem:[#allocation4 + $0x18] sm:$0xff]
    %v1215 = vld [vmem:[#allocation4 + $0x20] sm:$0xff]
    %v1216 = vld [vmem:[#allocation4 + $0x28] sm:$0xff]
    %v1217 = vld [vmem:[#allocation4 + $0x30] sm:$0xff]
    %v1218 = vld [vmem:[#allocation4 + $0x38] sm:$0xff]
    %v1219 = vld [vmem:[#allocation4 + $0x40] sm:$0xff]
    %v1220 = vld [vmem:[#allocation4 + $0x48] sm:$0xff]
    %v1221 = vld [vmem:[#allocation4 + $0x50] sm:$0xff]
    %v1222 = vld [vmem:[#allocation4 + $0x58] sm:$0xff]
    %v1223 = vld [vmem:[#allocation4 + $0x60] sm:$0xff]
    %v1224 = vld [vmem:[#allocation4 + $0x68] sm:$0xff]
    %v1225 = vld [vmem:[#allocation4 + $0x70] sm:$0xff]
    %v1226 = vld [vmem:[#allocation4 + $0x78] sm:$0xff]
    %v1227 = vmax.f32 %v1195, 1.0
    %v1228 = vmax.f32 %v1196, 1.0
    %v1229 = vmax.f32 %v1197, 1.0
    %v1230 = vmax.f32 %v1198, 1.0
    %v1231 = vmax.f32 %v1199, 1.0
    %v1232 = vmax.f32 %v1200, 1.0
    %v1233 = vmax.f32 %v1201, 1.0
    %v1234 = vmax.f32 %v1202, 1.0
    %v1235 = vmax.f32 %v1203, 1.0
    %v1236 = vmax.f32 %v1204, 1.0
    %v1237 = vmax.f32 %v1205, 1.0
    %v1238 = vmax.f32 %v1206, 1.0
    %v1239 = vmax.f32 %v1207, 1.0
    %v1240 = vmax.f32 %v1208, 1.0
    %v1241 = vmax.f32 %v1209, 1.0
    %v1242 = vmax.f32 %v1210, 1.0
    %v1243 = vrcp.pop %v1227
    %v1244 = vmul.f32 %v1211, %v1243
    %v1245 = vrcp.pop %v1228
    %v1246 = vmul.f32 %v1212, %v1245
    %v1247 = vrcp.pop %v1229
    %v1248 = vmul.f32 %v1213, %v1247
    %v1249 = vrcp.pop %v1230
    %v1250 = vmul.f32 %v1214, %v1249
    %v1251 = vrcp.pop %v1231
    %v1252 = vmul.f32 %v1215, %v1251
    %v1253 = vrcp.pop %v1232
    %v1254 = vmul.f32 %v1216, %v1253
    %v1255 = vrcp.pop %v1233
    %v1256 = vmul.f32 %v1217, %v1255
    %v1257 = vrcp.pop %v1234
    %v1258 = vmul.f32 %v1218, %v1257
    %v1259 = vrcp.pop %v1235
    %v1260 = vmul.f32 %v1219, %v1259
    %v1261 = vrcp.pop %v1236
    %v1262 = vmul.f32 %v1220, %v1261
    %v1263 = vrcp.pop %v1237
    %v1264 = vmul.f32 %v1221, %v1263
    %v1265 = vrcp.pop %v1238
    %v1266 = vmul.f32 %v1222, %v1265
    %v1267 = vrcp.pop %v1239
    %v1268 = vmul.f32 %v1223, %v1267
    %v1269 = vrcp.pop %v1240
    %v1270 = vmul.f32 %v1224, %v1269
    %v1271 = vrcp.pop %v1241
    %v1272 = vmul.f32 %v1225, %v1271
    %v1273 = vrcp.pop %v1242
    %v1274 = vmul.f32 %v1226, %v1273
    %v1275 = vsub.f32 %v1244, %v1179
    %v1276 = vsub.f32 %v1246, %v1180
    %v1277 = vsub.f32 %v1248, %v1181
    %v1278 = vsub.f32 %v1250, %v1182
    %v1279 = vsub.f32 %v1252, %v1183
    %v1280 = vsub.f32 %v1254, %v1184
    %v1281 = vsub.f32 %v1256, %v1185
    %v1282 = vsub.f32 %v1258, %v1186
    %v1283 = vsub.f32 %v1260, %v1187
    %v1284 = vsub.f32 %v1262, %v1188
    %v1285 = vsub.f32 %v1264, %v1189
    %v1286 = vsub.f32 %v1266, %v1190
    %v1287 = vsub.f32 %v1268, %v1191
    %v1288 = vsub.f32 %v1270, %v1192
    %v1289 = vsub.f32 %v1272, %v1193
    %v1290 = vsub.f32 %v1274, %v1194
    %v1291 = vmul.f32 %v1275, -1.0
    %v1292 = vmul.f32 %v1276, -1.0
    %v1293 = vmul.f32 %v1277, -1.0
    %v1294 = vmul.f32 %v1278, -1.0
    %v1295 = vmul.f32 %v1279, -1.0
    %v1296 = vmul.f32 %v1280, -1.0
    %v1297 = vmul.f32 %v1281, -1.0
    %v1298 = vmul.f32 %v1282, -1.0
    %v1299 = vmul.f32 %v1283, -1.0
    %v1300 = vmul.f32 %v1284, -1.0
    %v1301 = vmul.f32 %v1285, -1.0
    %v1302 = vmul.f32 %v1286, -1.0
    %v1303 = vmul.f32 %v1287, -1.0
    %v1304 = vmul.f32 %v1288, -1.0
    %v1305 = vmul.f32 %v1289, -1.0
    %v1306 = vmul.f32 %v1290, -1.0
    %vm1307 = vcmp.lt.s32.totalorder %v380, 16
    %vm1308 = vcmp.lt.s32.totalorder %v381, 16
    %vm1309 = vcmp.lt.s32.totalorder %v382, 16
    %vm1310 = vcmp.lt.s32.totalorder %v383, 16
    %vm1311 = vcmp.lt.s32.totalorder %v384, 16
    %vm1312 = vcmp.lt.s32.totalorder %v385, 16
    %vm1313 = vcmp.lt.s32.totalorder %v386, 16
    %vm1314 = vcmp.lt.s32.totalorder %v387, 16
    %vm1315 = vcmp.lt.s32.totalorder %v388, 16
    %vm1316 = vcmp.lt.s32.totalorder %v389, 16
    %vm1317 = vcmp.lt.s32.totalorder %v390, 16
    %vm1318 = vcmp.lt.s32.totalorder %v391, 16
    %vm1319 = vcmp.lt.s32.totalorder %v392, 16
    %vm1320 = vcmp.lt.s32.totalorder %v393, 16
    %vm1321 = vcmp.lt.s32.totalorder %v394, 16
    %vm1322 = vcmp.lt.s32.totalorder %v395, 16
    %vm1323 = vcmp.gt.f32.partialorder %v1195, 0.0
    %vm1324 = vcmp.gt.f32.partialorder %v1196, 0.0
    %vm1325 = vcmp.gt.f32.partialorder %v1197, 0.0
    %vm1326 = vcmp.gt.f32.partialorder %v1198, 0.0
    %vm1327 = vcmp.gt.f32.partialorder %v1199, 0.0
    %vm1328 = vcmp.gt.f32.partialorder %v1200, 0.0
    %vm1329 = vcmp.gt.f32.partialorder %v1201, 0.0
    %vm1330 = vcmp.gt.f32.partialorder %v1202, 0.0
    %vm1331 = vcmp.gt.f32.partialorder %v1203, 0.0
    %vm1332 = vcmp.gt.f32.partialorder %v1204, 0.0
    %vm1333 = vcmp.gt.f32.partialorder %v1205, 0.0
    %vm1334 = vcmp.gt.f32.partialorder %v1206, 0.0
    %vm1335 = vcmp.gt.f32.partialorder %v1207, 0.0
    %vm1336 = vcmp.gt.f32.partialorder %v1208, 0.0
    %vm1337 = vcmp.gt.f32.partialorder %v1209, 0.0
    %vm1338 = vcmp.gt.f32.partialorder %v1210, 0.0
    %vm1339 = vmand %vm1307, %vm1323
    %vm1340 = vmand %vm1308, %vm1324
    %vm1341 = vmand %vm1309, %vm1325
    %vm1342 = vmand %vm1310, %vm1326
    %vm1343 = vmand %vm1311, %vm1327
    %vm1344 = vmand %vm1312, %vm1328
    %vm1345 = vmand %vm1313, %vm1329
    %vm1346 = vmand %vm1314, %vm1330
    %vm1347 = vmand %vm1315, %vm1331
    %vm1348 = vmand %vm1316, %vm1332
    %vm1349 = vmand %vm1317, %vm1333
    %vm1350 = vmand %vm1318, %vm1334
    %vm1351 = vmand %vm1319, %vm1335
    %vm1352 = vmand %vm1320, %vm1336
    %vm1353 = vmand %vm1321, %vm1337
    %vm1354 = vmand %vm1322, %vm1338
    %v1355 = vsel %vm1339, %v1291, 0.0
    %v1356 = vsel %vm1340, %v1292, 0.0
    %v1357 = vsel %vm1341, %v1293, 0.0
    %v1358 = vsel %vm1342, %v1294, 0.0
    %v1359 = vsel %vm1343, %v1295, 0.0
    %v1360 = vsel %vm1344, %v1296, 0.0
    %v1361 = vsel %vm1345, %v1297, 0.0
    %v1362 = vsel %vm1346, %v1298, 0.0
    %v1363 = vsel %vm1347, %v1299, 0.0
    %v1364 = vsel %vm1348, %v1300, 0.0
    %v1365 = vsel %vm1349, %v1301, 0.0
    %v1366 = vsel %vm1350, %v1302, 0.0
    %v1367 = vsel %vm1351, %v1303, 0.0
    %v1368 = vsel %vm1352, %v1304, 0.0
    %v1369 = vsel %vm1353, %v1305, 0.0
    %v1370 = vsel %vm1354, %v1306, 0.0
    %1371 = vst.msk [vmem:[%s4] sm:$0xff] %vm615, %v1355
    %1372 = vst.msk [vmem:[%s4 + $0x8] sm:$0xff] %vm615, %v1356
    %1373 = vst.msk [vmem:[%s4 + $0x10] sm:$0xff] %vm615, %v1357
    %1374 = vst.msk [vmem:[%s4 + $0x18] sm:$0xff] %vm615, %v1358
    %1375 = vst.msk [vmem:[%s4 + $0x20] sm:$0xff] %vm615, %v1359
    %1376 = vst.msk [vmem:[%s4 + $0x28] sm:$0xff] %vm615, %v1360
    %1377 = vst.msk [vmem:[%s4 + $0x30] sm:$0xff] %vm615, %v1361
    %1378 = vst.msk [vmem:[%s4 + $0x38] sm:$0xff] %vm615, %v1362
    %1379 = vst.msk [vmem:[%s4 + $0x40] sm:$0xff] %vm615, %v1363
    %1380 = vst.msk [vmem:[%s4 + $0x48] sm:$0xff] %vm615, %v1364
    %1381 = vst.msk [vmem:[%s4 + $0x50] sm:$0xff] %vm615, %v1365
    %1382 = vst.msk [vmem:[%s4 + $0x58] sm:$0xff] %vm615, %v1366
    %1383 = vst.msk [vmem:[%s4 + $0x60] sm:$0xff] %vm615, %v1367
    %1384 = vst.msk [vmem:[%s4 + $0x68] sm:$0xff] %vm615, %v1368
    %1385 = vst.msk [vmem:[%s4 + $0x70] sm:$0xff] %vm615, %v1369
    %1386 = vst.msk [vmem:[%s4 + $0x78] sm:$0xff] %vm615, %v1370
  $region25: #{tpu_custom_call.1} parent=0 // pred_fallthru
    _
  // Predicated region
  $region26: #{tpu_custom_call.1} parent=0 // pred_check
    _
  $region27: #{tpu_custom_call.1} parent=0 // pred_check_branch
    %1388 = sbr.rel (0) target = $region29
  $region28: #{tpu_custom_call.1} parent=0 // pred_region
    _
  $region29: #{tpu_custom_call.1} parent=0 // pred_fallthru
    _
  // Predicated region
  $region30: #{tpu_custom_call.1} parent=0 // pred_check
    _
  $region31: #{tpu_custom_call.1} parent=0 // pred_check_branch
    %1390 = sbr.rel (0) target = $region33
  $region32: #{tpu_custom_call.1} parent=0 // pred_region
    _
  $region33: #{tpu_custom_call.1} parent=0 // pred_fallthru
    _

</llo_original>
